<compile_context>
chip_gen: v6e
topology: v6e:2x2x1
jax: 0.10.0
libtpu: 0.0.40
codegen_flags: <defaults>
</compile_context>

<pallas_src>
import jax
import jax.numpy as jnp
from jax.experimental import pallas as pl
from jax.experimental.pallas import tpu as pltpu

# ---- small, module-consistent shapes -------------------------------------
LATENT_DIM = 32
CHANNELS = 1
IMG_SIZE = 16
IMG_FLAT = CHANNELS * IMG_SIZE * IMG_SIZE       # 256
BATCH = 8

BN_EPS = 0.8        # nn.BatchNorm1d(out_feat, 0.8): 2nd positional arg is eps
LRELU_SLOPE = 0.2

HIDDEN = [LATENT_DIM, 128, 256, 512, 1024, IMG_FLAT]

# ---- packed layout for the small per-feature vectors ----------------------
# b1, BN gammas/betas, b5, and int8 per-column scales s3/s4/s5.
# All sizes are multiples of 128 -> every slice is lane aligned.
_VEC_LAYOUT = [
    ("b1", 128), ("g2", 256), ("be2", 256), ("g3", 512), ("be3", 512),
    ("g4", 1024), ("be4", 1024), ("b5", IMG_FLAT),
    ("s3", 512), ("s4", 1024), ("s5", IMG_FLAT),
]
_VEC_OFF = {}
_off = 0
for _name, _n in _VEC_LAYOUT:
    _VEC_OFF[_name] = (_off, _n)
    _off += _n
VEC_TOTAL = _off                                # 5760 = 45 * 128


def _leaky_relu(x):
    return jnp.where(x > 0, x, LRELU_SLOPE * x)


def _bn_lrelu(h_pre, g, be):
    # BatchNorm1d, training mode: batch mean + biased batch variance (two-pass).
    mean = jnp.mean(h_pre, axis=0, keepdims=True)
    xc = h_pre - mean
    var = jnp.mean(xc * xc, axis=0, keepdims=True)
    y = xc * (g * jax.lax.rsqrt(var + BN_EPS)) + be
    return _leaky_relu(y)


# ---- Pallas kernel: whole MLP fused, big weights DMA'd just-in-time --------
def generator_kernel(z_ref, w1_ref, w2_ref, w3_hbm, w4_hbm, w5_hbm, vec_ref,
                     out_ref, w3_buf, w4_buf, w5_buf, dma_sem):
    def vec(name):
        off, n = _VEC_OFF[name]
        return vec_ref[:, off:off + n]          # static, lane-aligned slice

    # Kick off background DMAs of the three big int8 weights (HBM -> VMEM).
    # Waits are just-in-time so early-layer compute overlaps the transfers.
    cp3 = pltpu.make_async_copy(w3_hbm, w3_buf, dma_sem.at[0])
    cp4 = pltpu.make_async_copy(w4_hbm, w4_buf, dma_sem.at[1])
    cp5 = pltpu.make_async_copy(w5_hbm, w5_buf, dma_sem.at[2])
    cp3.start()
    cp4.start()
    cp5.start()

    # block 1: Linear + bias + LeakyReLU (normalize=False)
    h = jnp.dot(z_ref[...].astype(jnp.bfloat16), w1_ref[...],
                preferred_element_type=jnp.float32)
    h = _leaky_relu(h + vec("b1"))

    # block 2: Linear (bf16 weight already resident) + BN + LeakyReLU
    # (pre-BN bias is exactly cancelled by BN mean subtraction -> dropped)
    h = jnp.dot(h.astype(jnp.bfloat16), w2_ref[...],
                preferred_element_type=jnp.float32)
    h = _bn_lrelu(h, vec("g2"), vec("be2"))

    # block 3: int8 weight, per-output-column scale applied to the f32 dot output
    cp3.wait()
    h = jnp.dot(h.astype(jnp.bfloat16), w3_buf[...].astype(jnp.bfloat16),
                preferred_element_type=jnp.float32) * vec("s3")
    h = _bn_lrelu(h, vec("g3"), vec("be3"))

    # block 4
    cp4.wait()
    h = jnp.dot(h.astype(jnp.bfloat16), w4_buf[...].astype(jnp.bfloat16),
                preferred_element_type=jnp.float32) * vec("s4")
    h = _bn_lrelu(h, vec("g4"), vec("be4"))

    # final Linear + Tanh
    cp5.wait()
    out = jnp.dot(h.astype(jnp.bfloat16), w5_buf[...].astype(jnp.bfloat16),
                  preferred_element_type=jnp.float32) * vec("s5") + vec("b5")
    out_ref[...] = jnp.tanh(out)


def generator_forward(z, w1, w2, wq3, wq4, wq5, vec):
    """w1/w2: bf16 (fan_in, fan_out); wq3/4/5: int8; vec: packed (1, VEC_TOTAL) f32."""
    vmem = pl.BlockSpec(memory_space=pltpu.MemorySpace.VMEM)
    hbm = pl.BlockSpec(memory_space=pl.ANY)     # raw HBM ref, manual DMA in-kernel
    out_flat = pl.pallas_call(
        generator_kernel,
        out_shape=jax.ShapeDtypeStruct((z.shape[0], IMG_FLAT), jnp.float32),
        in_specs=[vmem, vmem, vmem, hbm, hbm, hbm, vmem],
        out_specs=vmem,
        scratch_shapes=[
            pltpu.VMEM((HIDDEN[2], HIDDEN[3]), jnp.int8),   # (256, 512)
            pltpu.VMEM((HIDDEN[3], HIDDEN[4]), jnp.int8),   # (512, 1024)
            pltpu.VMEM((HIDDEN[4], HIDDEN[5]), jnp.int8),   # (1024, 256)
            pltpu.SemaphoreType.DMA((3,)),
        ],
        compiler_params=pltpu.CompilerParams(vmem_limit_bytes=16 << 20),
    )(z, w1, w2, wq3, wq4, wq5, vec)
    return out_flat.reshape(z.shape[0], CHANNELS, IMG_SIZE, IMG_SIZE)


# ---- deterministic parameter init (PyTorch Linear-style uniform) ----------
def _quantize_per_column(w):
    amax = jnp.max(jnp.abs(w), axis=0, keepdims=True)           # (1, N)
    scale = jnp.maximum(amax, 1e-30) / 127.0
    q = jnp.clip(jnp.round(w / scale), -127.0, 127.0).astype(jnp.int8)
    return q, scale.astype(jnp.float32)


def init_params(key):
    weights = {}
    small = {}
    for layer_idx, (fan_in, fan_out) in enumerate(zip(HIDDEN[:-1], HIDDEN[1:]), start=1):
        key, kw, kb = jax.random.split(key, 3)
        bound = 1.0 / (fan_in ** 0.5)
        w = jax.random.uniform(kw, (fan_in, fan_out), jnp.float32, -bound, bound)
        b = jax.random.uniform(kb, (1, fan_out), jnp.float32, -bound, bound)
        if layer_idx in (1, 2):
            weights[f"w{layer_idx}"] = w.astype(jnp.bfloat16)
        else:
            q, s = _quantize_per_column(w)
            weights[f"w{layer_idx}"] = q
            small[f"s{layer_idx}"] = s
        if layer_idx == 1:
            small["b1"] = b
        elif layer_idx == 5:
            small["b5"] = b
        else:
            # pre-BN bias is mathematically redundant in training-mode BN -> dropped.
            # BatchNorm affine params: gamma=1, beta=0 (PyTorch init).
            small[f"g{layer_idx}"] = jnp.ones((1, fan_out), jnp.float32)
            small[f"be{layer_idx}"] = jnp.zeros((1, fan_out), jnp.float32)
    vec = jnp.concatenate([small[name] for name, _ in _VEC_LAYOUT], axis=1)
    assert vec.shape == (1, VEC_TOTAL)
    return weights, vec


# ---- pure-JAX reference (same precision/quant choices) for verification ----
def reference_forward(z, weights, vec):
    def v(name):
        off, n = _VEC_OFF[name]
        return vec[:, off:off + n]

    h = jnp.dot(z.astype(jnp.bfloat16), weights["w1"],
                preferred_element_type=jnp.float32)
    h = _leaky_relu(h + v("b1"))

    h = jnp.dot(h.astype(jnp.bfloat16), weights["w2"],
                preferred_element_type=jnp.float32)
    h = _bn_lrelu(h, v("g2"), v("be2"))

    h = jnp.dot(h.astype(jnp.bfloat16), weights["w3"].astype(jnp.bfloat16),
                preferred_element_type=jnp.float32) * v("s3")
    h = _bn_lrelu(h, v("g3"), v("be3"))

    h = jnp.dot(h.astype(jnp.bfloat16), weights["w4"].astype(jnp.bfloat16),
                preferred_element_type=jnp.float32) * v("s4")
    h = _bn_lrelu(h, v("g4"), v("be4"))

    out = jnp.dot(h.astype(jnp.bfloat16), weights["w5"].astype(jnp.bfloat16),
                  preferred_element_type=jnp.float32) * v("s5") + v("b5")
    return jnp.tanh(out).reshape(z.shape[0], CHANNELS, IMG_SIZE, IMG_SIZE)


if __name__ == "__main__":
    key = jax.random.PRNGKey(0)
    key, kz = jax.random.split(key)
    z = jax.random.normal(kz, (BATCH, LATENT_DIM), jnp.float32)
    weights, vec = init_params(key)

    img = jax.block_until_ready(
        generator_forward(z, weights["w1"], weights["w2"],
                          weights["w3"], weights["w4"], weights["w5"], vec))
    assert img.shape == (BATCH, CHANNELS, IMG_SIZE, IMG_SIZE)
    assert img.dtype == jnp.float32

    ref = reference_forward(z, weights, vec)
    # int8/bf16 weights -> compare against a matching-precision reference with a
    # tolerance covering MXU vs XLA accumulation-order differences.
    assert jnp.allclose(img, ref, rtol=3e-3, atol=3e-3), "mismatch vs reference"

    print("KERNEL_OK")
</pallas_src>

<mosaic_0001>
module attributes {stable_mosaic.version = 11 : i64} {
  func.func @generator_kernel(%arg0: memref<8x32xf32, #tpu.memory_space<vmem>>, %arg1: memref<32x128xbf16, #tpu.memory_space<vmem>>, %arg2: memref<128x256xbf16, #tpu.memory_space<vmem>>, %arg3: memref<256x512xi8, #tpu.memory_space<any>>, %arg4: memref<512x1024xi8, #tpu.memory_space<any>>, %arg5: memref<1024x256xi8, #tpu.memory_space<any>>, %arg6: memref<1x5760xf32, #tpu.memory_space<vmem>>, %arg7: memref<8x256xf32, #tpu.memory_space<vmem>>, %arg8: memref<256x512xi8, #tpu.memory_space<vmem>>, %arg9: memref<512x1024xi8, #tpu.memory_space<vmem>>, %arg10: memref<1024x256xi8, #tpu.memory_space<vmem>>, %arg11: memref<3x!tpu.dma_semaphore, #tpu.memory_space<semaphore_mem>>) attributes {dimension_semantics = [], scalar_prefetch = 0 : i64, scratch_operands = 4 : i64, tpu.core_type = #tpu.core_type<tc>} {
    %c0_i32 = arith.constant 0 : i32
    %0 = tpu.memref_slice %arg11[%c0_i32] : memref<3x!tpu.dma_semaphore, #tpu.memory_space<semaphore_mem>> -> memref<1x!tpu.dma_semaphore, #tpu.memory_space<semaphore_mem>>
    %1 = tpu.memref_squeeze %0 : memref<1x!tpu.dma_semaphore, #tpu.memory_space<semaphore_mem>> -> memref<!tpu.dma_semaphore, #tpu.memory_space<semaphore_mem>>
    tpu.enqueue_dma source(%arg3 : memref<256x512xi8, #tpu.memory_space<any>>) target(%arg8 : memref<256x512xi8, #tpu.memory_space<vmem>>) target_semaphore(%1 : memref<!tpu.dma_semaphore, #tpu.memory_space<semaphore_mem>>)
    %c1_i32 = arith.constant 1 : i32
    %2 = tpu.memref_slice %arg11[%c1_i32] : memref<3x!tpu.dma_semaphore, #tpu.memory_space<semaphore_mem>> -> memref<1x!tpu.dma_semaphore, #tpu.memory_space<semaphore_mem>>
    %3 = tpu.memref_squeeze %2 : memref<1x!tpu.dma_semaphore, #tpu.memory_space<semaphore_mem>> -> memref<!tpu.dma_semaphore, #tpu.memory_space<semaphore_mem>>
    tpu.enqueue_dma source(%arg4 : memref<512x1024xi8, #tpu.memory_space<any>>) target(%arg9 : memref<512x1024xi8, #tpu.memory_space<vmem>>) target_semaphore(%3 : memref<!tpu.dma_semaphore, #tpu.memory_space<semaphore_mem>>)
    %c2_i32 = arith.constant 2 : i32
    %4 = tpu.memref_slice %arg11[%c2_i32] : memref<3x!tpu.dma_semaphore, #tpu.memory_space<semaphore_mem>> -> memref<1x!tpu.dma_semaphore, #tpu.memory_space<semaphore_mem>>
    %5 = tpu.memref_squeeze %4 : memref<1x!tpu.dma_semaphore, #tpu.memory_space<semaphore_mem>> -> memref<!tpu.dma_semaphore, #tpu.memory_space<semaphore_mem>>
    tpu.enqueue_dma source(%arg5 : memref<1024x256xi8, #tpu.memory_space<any>>) target(%arg10 : memref<1024x256xi8, #tpu.memory_space<vmem>>) target_semaphore(%5 : memref<!tpu.dma_semaphore, #tpu.memory_space<semaphore_mem>>)
    %c0 = arith.constant 0 : index
    %c0_0 = arith.constant 0 : index
    %6 = vector.load %arg0[%c0, %c0_0] : memref<8x32xf32, #tpu.memory_space<vmem>>, vector<8x32xf32>
    %7 = arith.truncf %6 : vector<8x32xf32> to vector<8x32xbf16>
    %c0_1 = arith.constant 0 : index
    %c0_2 = arith.constant 0 : index
    %8 = vector.load %arg1[%c0_1, %c0_2] : memref<32x128xbf16, #tpu.memory_space<vmem>>, vector<32x128xbf16>
    %cst = arith.constant dense<0.000000e+00> : vector<8x128xf32>
    %9 = tpu.matmul %7, %8, %cst {dimension_numbers = #tpu.dot_dimension_numbers<[1], [0], [0], [1], [0, 0, 1, 1], [], []>} : vector<8x32xbf16>, vector<32x128xbf16>, vector<8x128xf32> -> vector<8x128xf32>
    %c0_3 = arith.constant 0 : index
    %c0_4 = arith.constant 0 : index
    %10 = vector.load %arg6[%c0_3, %c0_4] : memref<1x5760xf32, #tpu.memory_space<vmem>>, vector<1x128xf32>
    %11 = vector.broadcast %10 : vector<1x128xf32> to vector<8x128xf32>
    %12 = arith.addf %9, %11 : vector<8x128xf32>
    %cst_5 = arith.constant 0.000000e+00 : f32
    %13 = vector.broadcast %cst_5 : f32 to vector<8x128xf32>
    %14 = arith.cmpf ogt, %12, %13 : vector<8x128xf32>
    %cst_6 = arith.constant 2.000000e-01 : f32
    %15 = vector.broadcast %cst_6 : f32 to vector<8x128xf32>
    %16 = arith.mulf %15, %12 : vector<8x128xf32>
    %17 = arith.select %14, %12, %16 : vector<8x128xi1>, vector<8x128xf32>
    %18 = arith.truncf %17 : vector<8x128xf32> to vector<8x128xbf16>
    %c0_7 = arith.constant 0 : index
    %c0_8 = arith.constant 0 : index
    %19 = vector.load %arg2[%c0_7, %c0_8] : memref<128x256xbf16, #tpu.memory_space<vmem>>, vector<128x256xbf16>
    %cst_9 = arith.constant dense<0.000000e+00> : vector<8x256xf32>
    %20 = tpu.matmul %18, %19, %cst_9 {dimension_numbers = #tpu.dot_dimension_numbers<[1], [0], [0], [1], [0, 0, 1, 1], [], []>} : vector<8x128xbf16>, vector<128x256xbf16>, vector<8x256xf32> -> vector<8x256xf32>
    %c0_10 = arith.constant 0 : index
    %c128 = arith.constant 128 : index
    %21 = vector.load %arg6[%c0_10, %c128] : memref<1x5760xf32, #tpu.memory_space<vmem>>, vector<1x256xf32>
    %c0_11 = arith.constant 0 : index
    %c384 = arith.constant 384 : index
    %22 = vector.load %arg6[%c0_11, %c384] : memref<1x5760xf32, #tpu.memory_space<vmem>>, vector<1x256xf32>
    %cst_12 = arith.constant dense<0.000000e+00> : vector<256xf32>
    %23 = vector.multi_reduction <add>, %20, %cst_12 [0] : vector<8x256xf32> to vector<256xf32>
    %24 = vector.shape_cast %23 : vector<256xf32> to vector<1x256xf32>
    %cst_13 = arith.constant 8.000000e+00 : f32
    %25 = vector.broadcast %cst_13 : f32 to vector<1x256xf32>
    %26 = arith.divf %24, %25 : vector<1x256xf32>
    %27 = vector.broadcast %26 : vector<1x256xf32> to vector<8x256xf32>
    %28 = arith.subf %20, %27 : vector<8x256xf32>
    %29 = arith.mulf %28, %28 : vector<8x256xf32>
    %cst_14 = arith.constant dense<0.000000e+00> : vector<256xf32>
    %30 = vector.multi_reduction <add>, %29, %cst_14 [0] : vector<8x256xf32> to vector<256xf32>
    %31 = vector.shape_cast %30 : vector<256xf32> to vector<1x256xf32>
    %cst_15 = arith.constant 8.000000e+00 : f32
    %32 = vector.broadcast %cst_15 : f32 to vector<1x256xf32>
    %33 = arith.divf %31, %32 : vector<1x256xf32>
    %cst_16 = arith.constant 8.000000e-01 : f32
    %34 = vector.broadcast %cst_16 : f32 to vector<1x256xf32>
    %35 = arith.addf %33, %34 : vector<1x256xf32>
    %36 = math.rsqrt %35 : vector<1x256xf32>
    %37 = arith.mulf %21, %36 : vector<1x256xf32>
    %38 = vector.broadcast %37 : vector<1x256xf32> to vector<8x256xf32>
    %39 = arith.mulf %28, %38 : vector<8x256xf32>
    %40 = vector.broadcast %22 : vector<1x256xf32> to vector<8x256xf32>
    %41 = arith.addf %39, %40 : vector<8x256xf32>
    %cst_17 = arith.constant 0.000000e+00 : f32
    %42 = vector.broadcast %cst_17 : f32 to vector<8x256xf32>
    %43 = arith.cmpf ogt, %41, %42 : vector<8x256xf32>
    %cst_18 = arith.constant 2.000000e-01 : f32
    %44 = vector.broadcast %cst_18 : f32 to vector<8x256xf32>
    %45 = arith.mulf %44, %41 : vector<8x256xf32>
    %46 = arith.select %43, %41, %45 : vector<8x256xi1>, vector<8x256xf32>
    %c0_i32_19 = arith.constant 0 : i32
    %47 = tpu.memref_slice %arg11[%c0_i32_19] : memref<3x!tpu.dma_semaphore, #tpu.memory_space<semaphore_mem>> -> memref<1x!tpu.dma_semaphore, #tpu.memory_space<semaphore_mem>>
    %48 = tpu.memref_squeeze %47 : memref<1x!tpu.dma_semaphore, #tpu.memory_space<semaphore_mem>> -> memref<!tpu.dma_semaphore, #tpu.memory_space<semaphore_mem>>
    tpu.wait_dma2 semaphore(%48 : memref<!tpu.dma_semaphore, #tpu.memory_space<semaphore_mem>>) src(%arg3 : memref<256x512xi8, #tpu.memory_space<any>>) dst(%arg8 : memref<256x512xi8, #tpu.memory_space<vmem>>)
    %49 = arith.truncf %46 : vector<8x256xf32> to vector<8x256xbf16>
    %c0_20 = arith.constant 0 : index
    %c0_21 = arith.constant 0 : index
    %50 = vector.load %arg8[%c0_20, %c0_21] : memref<256x512xi8, #tpu.memory_space<vmem>>, vector<256x512xi8>
    %51 = arith.sitofp %50 : vector<256x512xi8> to vector<256x512xbf16>
    %cst_22 = arith.constant dense<0.000000e+00> : vector<8x512xf32>
    %52 = tpu.matmul %49, %51, %cst_22 {dimension_numbers = #tpu.dot_dimension_numbers<[1], [0], [0], [1], [0, 0, 1, 1], [], []>} : vector<8x256xbf16>, vector<256x512xbf16>, vector<8x512xf32> -> vector<8x512xf32>
    %c0_23 = arith.constant 0 : index
    %c3968 = arith.constant 3968 : index
    %53 = vector.load %arg6[%c0_23, %c3968] : memref<1x5760xf32, #tpu.memory_space<vmem>>, vector<1x512xf32>
    %54 = vector.broadcast %53 : vector<1x512xf32> to vector<8x512xf32>
    %55 = arith.mulf %52, %54 : vector<8x512xf32>
    %c0_24 = arith.constant 0 : index
    %c640 = arith.constant 640 : index
    %56 = vector.load %arg6[%c0_24, %c640] : memref<1x5760xf32, #tpu.memory_space<vmem>>, vector<1x512xf32>
    %c0_25 = arith.constant 0 : index
    %c1152 = arith.constant 1152 : index
    %57 = vector.load %arg6[%c0_25, %c1152] : memref<1x5760xf32, #tpu.memory_space<vmem>>, vector<1x512xf32>
    %cst_26 = arith.constant dense<0.000000e+00> : vector<512xf32>
    %58 = vector.multi_reduction <add>, %55, %cst_26 [0] : vector<8x512xf32> to vector<512xf32>
    %59 = vector.shape_cast %58 : vector<512xf32> to vector<1x512xf32>
    %cst_27 = arith.constant 8.000000e+00 : f32
    %60 = vector.broadcast %cst_27 : f32 to vector<1x512xf32>
    %61 = arith.divf %59, %60 : vector<1x512xf32>
    %62 = vector.broadcast %61 : vector<1x512xf32> to vector<8x512xf32>
    %63 = arith.subf %55, %62 : vector<8x512xf32>
    %64 = arith.mulf %63, %63 : vector<8x512xf32>
    %cst_28 = arith.constant dense<0.000000e+00> : vector<512xf32>
    %65 = vector.multi_reduction <add>, %64, %cst_28 [0] : vector<8x512xf32> to vector<512xf32>
    %66 = vector.shape_cast %65 : vector<512xf32> to vector<1x512xf32>
    %cst_29 = arith.constant 8.000000e+00 : f32
    %67 = vector.broadcast %cst_29 : f32 to vector<1x512xf32>
    %68 = arith.divf %66, %67 : vector<1x512xf32>
    %cst_30 = arith.constant 8.000000e-01 : f32
    %69 = vector.broadcast %cst_30 : f32 to vector<1x512xf32>
    %70 = arith.addf %68, %69 : vector<1x512xf32>
    %71 = math.rsqrt %70 : vector<1x512xf32>
    %72 = arith.mulf %56, %71 : vector<1x512xf32>
    %73 = vector.broadcast %72 : vector<1x512xf32> to vector<8x512xf32>
    %74 = arith.mulf %63, %73 : vector<8x512xf32>
    %75 = vector.broadcast %57 : vector<1x512xf32> to vector<8x512xf32>
    %76 = arith.addf %74, %75 : vector<8x512xf32>
    %cst_31 = arith.constant 0.000000e+00 : f32
    %77 = vector.broadcast %cst_31 : f32 to vector<8x512xf32>
    %78 = arith.cmpf ogt, %76, %77 : vector<8x512xf32>
    %cst_32 = arith.constant 2.000000e-01 : f32
    %79 = vector.broadcast %cst_32 : f32 to vector<8x512xf32>
    %80 = arith.mulf %79, %76 : vector<8x512xf32>
    %81 = arith.select %78, %76, %80 : vector<8x512xi1>, vector<8x512xf32>
    %c1_i32_33 = arith.constant 1 : i32
    %82 = tpu.memref_slice %arg11[%c1_i32_33] : memref<3x!tpu.dma_semaphore, #tpu.memory_space<semaphore_mem>> -> memref<1x!tpu.dma_semaphore, #tpu.memory_space<semaphore_mem>>
    %83 = tpu.memref_squeeze %82 : memref<1x!tpu.dma_semaphore, #tpu.memory_space<semaphore_mem>> -> memref<!tpu.dma_semaphore, #tpu.memory_space<semaphore_mem>>
    tpu.wait_dma2 semaphore(%83 : memref<!tpu.dma_semaphore, #tpu.memory_space<semaphore_mem>>) src(%arg4 : memref<512x1024xi8, #tpu.memory_space<any>>) dst(%arg9 : memref<512x1024xi8, #tpu.memory_space<vmem>>)
    %84 = arith.truncf %81 : vector<8x512xf32> to vector<8x512xbf16>
    %c0_34 = arith.constant 0 : index
    %c0_35 = arith.constant 0 : index
    %85 = vector.load %arg9[%c0_34, %c0_35] : memref<512x1024xi8, #tpu.memory_space<vmem>>, vector<512x1024xi8>
    %86 = arith.sitofp %85 : vector<512x1024xi8> to vector<512x1024xbf16>
    %cst_36 = arith.constant dense<0.000000e+00> : vector<8x1024xf32>
    %87 = tpu.matmul %84, %86, %cst_36 {dimension_numbers = #tpu.dot_dimension_numbers<[1], [0], [0], [1], [0, 0, 1, 1], [], []>} : vector<8x512xbf16>, vector<512x1024xbf16>, vector<8x1024xf32> -> vector<8x1024xf32>
    %c0_37 = arith.constant 0 : index
    %c4480 = arith.constant 4480 : index
    %88 = vector.load %arg6[%c0_37, %c4480] : memref<1x5760xf32, #tpu.memory_space<vmem>>, vector<1x1024xf32>
    %89 = vector.broadcast %88 : vector<1x1024xf32> to vector<8x1024xf32>
    %90 = arith.mulf %87, %89 : vector<8x1024xf32>
    %c0_38 = arith.constant 0 : index
    %c1664 = arith.constant 1664 : index
    %91 = vector.load %arg6[%c0_38, %c1664] : memref<1x5760xf32, #tpu.memory_space<vmem>>, vector<1x1024xf32>
    %c0_39 = arith.constant 0 : index
    %c2688 = arith.constant 2688 : index
    %92 = vector.load %arg6[%c0_39, %c2688] : memref<1x5760xf32, #tpu.memory_space<vmem>>, vector<1x1024xf32>
    %cst_40 = arith.constant dense<0.000000e+00> : vector<1024xf32>
    %93 = vector.multi_reduction <add>, %90, %cst_40 [0] : vector<8x1024xf32> to vector<1024xf32>
    %94 = vector.shape_cast %93 : vector<1024xf32> to vector<1x1024xf32>
    %cst_41 = arith.constant 8.000000e+00 : f32
    %95 = vector.broadcast %cst_41 : f32 to vector<1x1024xf32>
    %96 = arith.divf %94, %95 : vector<1x1024xf32>
    %97 = vector.broadcast %96 : vector<1x1024xf32> to vector<8x1024xf32>
    %98 = arith.subf %90, %97 : vector<8x1024xf32>
    %99 = arith.mulf %98, %98 : vector<8x1024xf32>
    %cst_42 = arith.constant dense<0.000000e+00> : vector<1024xf32>
    %100 = vector.multi_reduction <add>, %99, %cst_42 [0] : vector<8x1024xf32> to vector<1024xf32>
    %101 = vector.shape_cast %100 : vector<1024xf32> to vector<1x1024xf32>
    %cst_43 = arith.constant 8.000000e+00 : f32
    %102 = vector.broadcast %cst_43 : f32 to vector<1x1024xf32>
    %103 = arith.divf %101, %102 : vector<1x1024xf32>
    %cst_44 = arith.constant 8.000000e-01 : f32
    %104 = vector.broadcast %cst_44 : f32 to vector<1x1024xf32>
    %105 = arith.addf %103, %104 : vector<1x1024xf32>
    %106 = math.rsqrt %105 : vector<1x1024xf32>
    %107 = arith.mulf %91, %106 : vector<1x1024xf32>
    %108 = vector.broadcast %107 : vector<1x1024xf32> to vector<8x1024xf32>
    %109 = arith.mulf %98, %108 : vector<8x1024xf32>
    %110 = vector.broadcast %92 : vector<1x1024xf32> to vector<8x1024xf32>
    %111 = arith.addf %109, %110 : vector<8x1024xf32>
    %cst_45 = arith.constant 0.000000e+00 : f32
    %112 = vector.broadcast %cst_45 : f32 to vector<8x1024xf32>
    %113 = arith.cmpf ogt, %111, %112 : vector<8x1024xf32>
    %cst_46 = arith.constant 2.000000e-01 : f32
    %114 = vector.broadcast %cst_46 : f32 to vector<8x1024xf32>
    %115 = arith.mulf %114, %111 : vector<8x1024xf32>
    %116 = arith.select %113, %111, %115 : vector<8x1024xi1>, vector<8x1024xf32>
    %c2_i32_47 = arith.constant 2 : i32
    %117 = tpu.memref_slice %arg11[%c2_i32_47] : memref<3x!tpu.dma_semaphore, #tpu.memory_space<semaphore_mem>> -> memref<1x!tpu.dma_semaphore, #tpu.memory_space<semaphore_mem>>
    %118 = tpu.memref_squeeze %117 : memref<1x!tpu.dma_semaphore, #tpu.memory_space<semaphore_mem>> -> memref<!tpu.dma_semaphore, #tpu.memory_space<semaphore_mem>>
    tpu.wait_dma2 semaphore(%118 : memref<!tpu.dma_semaphore, #tpu.memory_space<semaphore_mem>>) src(%arg5 : memref<1024x256xi8, #tpu.memory_space<any>>) dst(%arg10 : memref<1024x256xi8, #tpu.memory_space<vmem>>)
    %119 = arith.truncf %116 : vector<8x1024xf32> to vector<8x1024xbf16>
    %c0_48 = arith.constant 0 : index
    %c0_49 = arith.constant 0 : index
    %120 = vector.load %arg10[%c0_48, %c0_49] : memref<1024x256xi8, #tpu.memory_space<vmem>>, vector<1024x256xi8>
    %121 = arith.sitofp %120 : vector<1024x256xi8> to vector<1024x256xbf16>
    %cst_50 = arith.constant dense<0.000000e+00> : vector<8x256xf32>
    %122 = tpu.matmul %119, %121, %cst_50 {dimension_numbers = #tpu.dot_dimension_numbers<[1], [0], [0], [1], [0, 0, 1, 1], [], []>} : vector<8x1024xbf16>, vector<1024x256xbf16>, vector<8x256xf32> -> vector<8x256xf32>
    %c0_51 = arith.constant 0 : index
    %c5504 = arith.constant 5504 : index
    %123 = vector.load %arg6[%c0_51, %c5504] : memref<1x5760xf32, #tpu.memory_space<vmem>>, vector<1x256xf32>
    %124 = vector.broadcast %123 : vector<1x256xf32> to vector<8x256xf32>
    %125 = arith.mulf %122, %124 : vector<8x256xf32>
    %c0_52 = arith.constant 0 : index
    %c3712 = arith.constant 3712 : index
    %126 = vector.load %arg6[%c0_52, %c3712] : memref<1x5760xf32, #tpu.memory_space<vmem>>, vector<1x256xf32>
    %127 = vector.broadcast %126 : vector<1x256xf32> to vector<8x256xf32>
    %128 = arith.addf %125, %127 : vector<8x256xf32>
    %129 = math.tanh %128 : vector<8x256xf32>
    %c0_53 = arith.constant 0 : index
    %c0_54 = arith.constant 0 : index
    %130 = vector.load %arg7[%c0_53, %c0_54] : memref<8x256xf32, #tpu.memory_space<vmem>>, vector<8x256xf32>
    tpu.vector_store %arg7[%c0_53, %c0_54], %129 {strides = array<i32>} : memref<8x256xf32, #tpu.memory_space<vmem>>, vector<8x256xf32>,
    return
  }
}

</mosaic_0001>

<llo_original>
// kernel: tpu_custom_call.1
$region0: #{tpu_custom_call.1}
  #allocation0 [shape = 'u32[]', space=smem, size = 0x4, offset = 0x4, fixed_abs, tag = 'smem constant byte address 0x4 - core index']
  #allocation1 [shape = 'u32[144,128]{1,0:T(1,128)}', space=vmem, size = 0x12000, scoped, tag = 'internal scratch']
  #allocation2 [shape = 's8[256,512]{1,0:T(32,128)(4,1)}', space=vmem, size = 0x20000, scoped, tag = 'scratch operand']
  #allocation3 [shape = 's8[512,1024]{1,0:T(32,128)(4,1)}', space=vmem, size = 0x80000, scoped, tag = 'scratch operand']
  #allocation4 [shape = 's8[1024,256]{1,0:T(32,128)(4,1)}', space=vmem, size = 0x40000, scoped, tag = 'scratch operand']
  #allocation5 [shape = 's32[3]{0}', space=sflag, size = 0xc, scoped, tag = 'scratch operand']
  #allocation15 [shape = 's32[]', space=sflag, size = 0x4, offset = 0, fixed_abs, tag = 'sflag constant byte address 0x0 - dummy sync flag']
  #allocation16 [shape = 's32[]', space=sflag, size = 0x4, offset = 0, fixed_abs, tag = 'sflag constant byte address 0x0 - dummy sync flag']
  #allocation17 [shape = 'u32[]', space=smem, size = 0x4, offset = 0x44, fixed_abs, tag = 'smem constant byte address 0x44 - assertion arg 0']
  #allocation18 [shape = 'u32[]', space=smem, size = 0x4, offset = 0x48, fixed_abs, tag = 'smem constant byte address 0x48 - assertion arg 1']
  #allocation19 [shape = 's32[]', space=sflag, size = 0x4, offset = 0, fixed_abs, tag = 'sflag constant byte address 0x0 - dummy sync flag']
  #allocation20 [shape = 's32[]', space=sflag, size = 0x4, offset = 0, fixed_abs, tag = 'sflag constant byte address 0x0 - dummy sync flag']
  #allocation21 [shape = 's32[]', space=sflag, size = 0x4, offset = 0, fixed_abs, tag = 'sflag constant byte address 0x0 - dummy sync flag']
  #allocation22 [shape = 's32[]', space=sflag, size = 0x4, offset = 0, fixed_abs, tag = 'sflag constant byte address 0x0 - dummy sync flag']
  %s0 = inlined_call_operand.hbm [shape: f32[8,32], index: 0, kind: input, shape index: {}]
  %s1 = inlined_call_operand.hbm [shape: bf16[32,128], index: 1, kind: input, shape index: {}]
  %s2 = inlined_call_operand.hbm [shape: bf16[128,256], index: 2, kind: input, shape index: {}]
  %s3 = inlined_call_operand.hbm [shape: s8[256,512], index: 3, kind: input, shape index: {}]
  %s4 = inlined_call_operand.hbm [shape: s8[512,1024], index: 4, kind: input, shape index: {}]
  %s5 = inlined_call_operand.hbm [shape: s8[1024,256], index: 5, kind: input, shape index: {}]
  %s6 = inlined_call_operand.hbm [shape: f32[1,5760], index: 6, kind: input, shape index: {}]
  %s7 = inlined_call_operand.hbm [shape: f32[8,256], index: 7, kind: output, shape index: {}]
  %s8 = sld [smem:[#allocation0]]
  $region54: #{tpu_custom_call.1} parent=0
    _
  %s10 = ssub.s32 1, %s8
  %s11 = scalar_select 0, %s10, %s8
  $region1: #{tpu_custom_call.1} parent=0
    #allocation6 [shape = 'u8[4096]{0}', space=vmem, size = 0x1000, scoped, tag = 'input window, operand 0, single buffered']
    #allocation7 [shape = 's32[1]{0}', space=sflag, size = 0x4, scoped, tag = 'scoped memory for tpu_custom_call.1']
    #allocation8 [shape = 's32[1]{0}', space=sflag, size = 0x4, scoped, tag = 'scoped memory for tpu_custom_call.1']
    #allocation9 [shape = 'u8[8192]{0}', space=vmem, size = 0x2000, scoped, tag = 'input window, operand 1, single buffered']
    #allocation10 [shape = 's32[1]{0}', space=sflag, size = 0x4, scoped, tag = 'scoped memory for tpu_custom_call.1']
    #allocation11 [shape = 'u8[65536]{0}', space=vmem, size = 0x10000, scoped, tag = 'input window, operand 2, single buffered']
    #allocation12 [shape = 'u8[23040]{0}', space=vmem, size = 0x5c00, scoped, tag = 'input window, operand 6, single buffered']
    #allocation13 [shape = 's32[1]{0}', space=sflag, size = 0x4, scoped, tag = 'scoped memory for tpu_custom_call.1']
    #allocation14 [shape = 'u8[8192]{0}', space=vmem, size = 0x2000, scoped, tag = 'output window, operand 0, single buffered']
    %12 = vsyncpa [#allocation7], 0
    %13 = vsyncpa [#allocation10], 0
    %14 = vsyncpa [#allocation13], 0
    %15 = vsyncpa [#allocation8], 0
    // Predicated region
    $region2: #{tpu_custom_call.1} parent=1 // pred_check
      _
    $region3: #{tpu_custom_call.1} parent=1 // pred_check_branch
      %17 = sbr.rel (0) target = $region5
    $region4: #{tpu_custom_call.1} parent=1 // pred_region
      %s19 = ssub.s32 128, 128
      %20 = vsyncadd [#allocation7], %s19
      %s22 = sshll.u32 [#allocation6], 4
      %s23 = int_to_ptr.vmem [resolvable:$true] %s22
      %25 = dma.hbm_to_vmem [thread:$0]  %s0, 128, %s23, [#allocation7]
    $region5: #{tpu_custom_call.1} parent=1 // pred_fallthru
      _
    // Predicated region
    $region6: #{tpu_custom_call.1} parent=1 // pred_check
      _
    $region7: #{tpu_custom_call.1} parent=1 // pred_check_branch
      %27 = sbr.rel (0) target = $region9
    $region8: #{tpu_custom_call.1} parent=1 // pred_region
      %s29 = ssub.s32 256, 256
      %30 = vsyncadd [#allocation10], %s29
      %s31 = sshll.u32 [#allocation9], 4
      %s32 = int_to_ptr.vmem [resolvable:$true] %s31
      %37 = dma.hbm_to_vmem [thread:$0]  %s1, 256, %s32, [#allocation10], 64, 64, 4
    $region9: #{tpu_custom_call.1} parent=1 // pred_fallthru
      _
    // Predicated region
    $region10: #{tpu_custom_call.1} parent=1 // pred_check
      _
    $region11: #{tpu_custom_call.1} parent=1 // pred_check_branch
      %39 = sbr.rel (0) target = $region13
    $region12: #{tpu_custom_call.1} parent=1 // pred_region
      %s41 = ssub.s32 2048, 2048
      %42 = vsyncadd [#allocation10], %s41
      %s43 = sshll.u32 [#allocation11], 4
      %s44 = int_to_ptr.vmem [resolvable:$true] %s43
      %49 = dma.hbm_to_vmem [thread:$0]  %s2, 2048, %s44, [#allocation10], 128, 128, 8
    $region13: #{tpu_custom_call.1} parent=1 // pred_fallthru
      _
    // Predicated region
    $region14: #{tpu_custom_call.1} parent=1 // pred_check
      _
    $region15: #{tpu_custom_call.1} parent=1 // pred_check_branch
      %51 = sbr.rel (0) target = $region17
    $region16: #{tpu_custom_call.1} parent=1 // pred_region
      %s53 = ssub.s32 720, 720
      %54 = vsyncadd [#allocation13], %s53
      %s56 = sshll.u32 [#allocation12], 4
      %s57 = int_to_ptr.vmem [resolvable:$true] %s56
      %59 = dma.hbm_to_vmem [thread:$0]  %s6, 720, %s57, [#allocation13]
    $region17: #{tpu_custom_call.1} parent=1 // pred_fallthru
      _
    // Predicated region
    $region18: #{tpu_custom_call.1} parent=1 // pred_check
      _
    $region19: #{tpu_custom_call.1} parent=1 // pred_check_branch
      %61 = sbr.rel (0) target = $region21
    $region20: #{tpu_custom_call.1} parent=1 // pred_region
      %62 = dma.done [#allocation7], 128
    $region21: #{tpu_custom_call.1} parent=1 // pred_fallthru
      _
    // Predicated region
    $region22: #{tpu_custom_call.1} parent=1 // pred_check
      _
    $region23: #{tpu_custom_call.1} parent=1 // pred_check_branch
      %64 = sbr.rel (0) target = $region25
    $region24: #{tpu_custom_call.1} parent=1 // pred_region
      %65 = dma.done [#allocation10], 256
    $region25: #{tpu_custom_call.1} parent=1 // pred_fallthru
      _
    // Predicated region
    $region26: #{tpu_custom_call.1} parent=1 // pred_check
      _
    $region27: #{tpu_custom_call.1} parent=1 // pred_check_branch
      %67 = sbr.rel (0) target = $region29
    $region28: #{tpu_custom_call.1} parent=1 // pred_region
      %68 = dma.done [#allocation10], 2048
    $region29: #{tpu_custom_call.1} parent=1 // pred_fallthru
      _
    // Predicated region
    $region30: #{tpu_custom_call.1} parent=1 // pred_check
      _
    $region31: #{tpu_custom_call.1} parent=1 // pred_check_branch
      %70 = sbr.rel (0) target = $region33
    $region32: #{tpu_custom_call.1} parent=1 // pred_region
      %71 = dma.done [#allocation13], 720
    $region33: #{tpu_custom_call.1} parent=1 // pred_fallthru
      _
    // Predicated region
    $region34: #{tpu_custom_call.1} parent=1 // pred_check
      _
    $region35: #{tpu_custom_call.1} parent=1 // pred_check_branch
      %74 = sbr.rel target = $region37
    $region36: #{tpu_custom_call.1} parent=1 // pred_region
      %75 = sst [smem:[#allocation17]] [#allocation16]
      %76 = sst [smem:[#allocation18]] [#allocation15]
    $region37: #{tpu_custom_call.1} parent=1 // pred_fallthru
      _
    %78 = shalt.err (0)
    %s80 = sshll.u32 [#allocation2], 4
    %s81 = int_to_ptr.vmem [resolvable:$true] %s80
    %83 = dma.hbm_to_vmem [thread:$0]  %s3, 4096, %s81, [#allocation5]
    %s84 = scalar_lea.sflag [#allocation5], 1
    // Predicated region
    $region38: #{tpu_custom_call.1} parent=1 // pred_check
      _
    $region39: #{tpu_custom_call.1} parent=1 // pred_check_branch
      %86 = sbr.rel target = $region41
    $region40: #{tpu_custom_call.1} parent=1 // pred_region
      %87 = sst [smem:[#allocation17]] [#allocation20]
      %88 = sst [smem:[#allocation18]] [#allocation19]
    $region41: #{tpu_custom_call.1} parent=1 // pred_fallthru
      _
    %90 = shalt.err (0)
    %s92 = sshll.u32 [#allocation3], 4
    %s93 = int_to_ptr.vmem [resolvable:$true] %s92
    %95 = dma.hbm_to_vmem [thread:$0]  %s4, 16384, %s93, %s84
    %s96 = scalar_lea.sflag [#allocation5], 2
    // Predicated region
    $region42: #{tpu_custom_call.1} parent=1 // pred_check
      _
    $region43: #{tpu_custom_call.1} parent=1 // pred_check_branch
      %98 = sbr.rel target = $region45
    $region44: #{tpu_custom_call.1} parent=1 // pred_region
      %99 = sst [smem:[#allocation17]] [#allocation22]
      %100 = sst [smem:[#allocation18]] [#allocation21]
    $region45: #{tpu_custom_call.1} parent=1 // pred_fallthru
      _
    %102 = shalt.err (0)
    %s104 = sshll.u32 [#allocation4], 4
    %s105 = int_to_ptr.vmem [resolvable:$true] %s104
    %107 = dma.hbm_to_vmem [thread:$0]  %s5, 8192, %s105, %s96
    %v108 = vld [vmem:[#allocation6] sm:$0xff]
    %v109 = vpack.c.bf16 %v108, %v108
    %v110 = vld [vmem:[#allocation9] sm:$0xf]
    %v111 = vld [vmem:[#allocation9 + $0x4] sm:$0xf]
    %v112 = vld [vmem:[#allocation9 + $0x8] sm:$0xf]
    %v113 = vld [vmem:[#allocation9 + $0xc] sm:$0xf]
    %v114 = vld [vmem:[#allocation12] sm:$0x1]
    %v116 = vlaneseq
    %v117 = vshrl.u32 %v116, 7
    %v118 = vsub.s32 0, %v117
    %v119 = vrot.slane %v114, %v118
    %v125 = vunpack.c.l.b16 %v110
    %v126 = vunpack.c.l.b16 %v111
    %v127 = vunpack.c.l.b16 %v112
    %v128 = vunpack.c.l.b16 %v113
    %v129 = vpack.c.b16 %v126, %v125
    %v130 = vpack.c.b16 %v128, %v127
    %vm133 = vcmask 261120
    %v135 = vsel %vm133, %v109, 0
    %137 = vmatprep.subr.bf16.mxu0 0
    %138 = vmatpush1.bf16.msra.mxu0 0
    %139 = vmatprep.subr.bf16.mxu0 0
    %140 = vmatpush1.bf16.msra.mxu0 0
    %141 = vmatprep.subr.bf16.mxu0 0
    %142 = vmatpush1.bf16.msra.mxu0 0
    %143 = vmatprep.subr.bf16.mxu0 0
    %144 = vmatpush1.bf16.msra.mxu0 0
    %145 = vmatprep.subr.bf16.mxu0 0
    %146 = vmatpush1.bf16.msra.mxu0 0
    %147 = vmatprep.subr.bf16.mxu0 0
    %148 = vmatpush1.bf16.msra.mxu0 0
    %149 = vmatprep.subr.bf16.mxu0 0
    %150 = vmatpush1.bf16.msra.mxu0 %v130
    %151 = vmatprep.subr.bf16.mxu0 0
    %152 = vmatpush1.bf16.msra.mxu0 %v129
    %153 = vmatprep.subr.bf16.mxu0 0
    %154 = vmatpush2.bf16.msra.mxu0 0
    %155 = vmatprep.subr.bf16.mxu0 0
    %156 = vmatpush2.bf16.msra.mxu0 0
    %157 = vmatprep.subr.bf16.mxu0 0
    %158 = vmatpush2.bf16.msra.mxu0 0
    %159 = vmatprep.subr.bf16.mxu0 0
    %160 = vmatpush2.bf16.msra.mxu0 0
    %161 = vmatprep.subr.bf16.mxu0 0
    %162 = vmatpush2.bf16.msra.mxu0 0
    %163 = vmatprep.subr.bf16.mxu0 0
    %164 = vmatpush2.bf16.msra.mxu0 0
    %165 = vmatprep.subr.bf16.mxu0 0
    %166 = vmatpush2.bf16.msra.mxu0 0
    %167 = vmatprep.subr.bf16.mxu0 0
    %168 = vmatpush2.bf16.msra.mxu0 0
    %169 = vmatprep.mubr.bf16.mxu0 0
    %170 = vmatmul.mubr.bf16.gmra.mxu0 %v135
    %v171 = vpop.f32.mrf.mxu0
    %v172 = vadd.f32 %v119, %v171
    %v173 = vpop.f32.mrf.mxu0
    %v174 = vpop.f32.mrf.mxu0
    %v175 = vpop.f32.mrf.mxu0
    %176 = vdwg.mxu0
    %vm177 = vcmp.gt.f32.partialorder %v172, 0.0
    %v178 = vmul.f32 %v172, 0.2
    %v179 = vsel %vm177, %v172, %v178
    %v180 = vpack.c.bf16 %v179, %v179
    %v181 = vld [vmem:[#allocation11] sm:$0xff]
    %v182 = vld [vmem:[#allocation11 + $0x8] sm:$0xff]
    %v183 = vld [vmem:[#allocation11 + $0x10] sm:$0xff]
    %v184 = vld [vmem:[#allocation11 + $0x18] sm:$0xff]
    %v185 = vld [vmem:[#allocation11 + $0x20] sm:$0xff]
    %v186 = vld [vmem:[#allocation11 + $0x28] sm:$0xff]
    %v187 = vld [vmem:[#allocation11 + $0x30] sm:$0xff]
    %v188 = vld [vmem:[#allocation11 + $0x38] sm:$0xff]
    %v189 = vld [vmem:[#allocation11 + $0x40] sm:$0xff]
    %v190 = vld [vmem:[#allocation11 + $0x48] sm:$0xff]
    %v191 = vld [vmem:[#allocation11 + $0x50] sm:$0xff]
    %v192 = vld [vmem:[#allocation11 + $0x58] sm:$0xff]
    %v193 = vld [vmem:[#allocation11 + $0x60] sm:$0xff]
    %v194 = vld [vmem:[#allocation11 + $0x68] sm:$0xff]
    %v195 = vld [vmem:[#allocation11 + $0x70] sm:$0xff]
    %v196 = vld [vmem:[#allocation11 + $0x78] sm:$0xff]
    %v213 = vunpack.c.l.b16 %v181
    %v214 = vunpack.c.h.b16 %v181
    %v215 = vunpack.c.l.b16 %v182
    %v216 = vunpack.c.h.b16 %v182
    %v217 = vunpack.c.l.b16 %v183
    %v218 = vunpack.c.h.b16 %v183
    %v219 = vunpack.c.l.b16 %v184
    %v220 = vunpack.c.h.b16 %v184
    %v221 = vunpack.c.l.b16 %v185
    %v222 = vunpack.c.h.b16 %v185
    %v223 = vunpack.c.l.b16 %v186
    %v224 = vunpack.c.h.b16 %v186
    %v225 = vunpack.c.l.b16 %v187
    %v226 = vunpack.c.h.b16 %v187
    %v227 = vunpack.c.l.b16 %v188
    %v228 = vunpack.c.h.b16 %v188
    %v229 = vunpack.c.l.b16 %v189
    %v230 = vunpack.c.h.b16 %v189
    %v231 = vunpack.c.l.b16 %v190
    %v232 = vunpack.c.h.b16 %v190
    %v233 = vunpack.c.l.b16 %v191
    %v234 = vunpack.c.h.b16 %v191
    %v235 = vunpack.c.l.b16 %v192
    %v236 = vunpack.c.h.b16 %v192
    %v237 = vunpack.c.l.b16 %v193
    %v238 = vunpack.c.h.b16 %v193
    %v239 = vunpack.c.l.b16 %v194
    %v240 = vunpack.c.h.b16 %v194
    %v241 = vunpack.c.l.b16 %v195
    %v242 = vunpack.c.h.b16 %v195
    %v243 = vunpack.c.l.b16 %v196
    %v244 = vunpack.c.h.b16 %v196
    %v245 = vpack.c.b16 %v215, %v213
    %v246 = vpack.c.b16 %v216, %v214
    %v247 = vpack.c.b16 %v219, %v217
    %v248 = vpack.c.b16 %v220, %v218
    %v249 = vpack.c.b16 %v223, %v221
    %v250 = vpack.c.b16 %v224, %v222
    %v251 = vpack.c.b16 %v227, %v225
    %v252 = vpack.c.b16 %v228, %v226
    %v253 = vpack.c.b16 %v231, %v229
    %v254 = vpack.c.b16 %v232, %v230
    %v255 = vpack.c.b16 %v235, %v233
    %v256 = vpack.c.b16 %v236, %v234
    %v257 = vpack.c.b16 %v239, %v237
    %v258 = vpack.c.b16 %v240, %v238
    %v259 = vpack.c.b16 %v243, %v241
    %v260 = vpack.c.b16 %v244, %v242
    %277 = vmatprep.subr.bf16.mxu0 %v260
    %278 = vmatpush1.bf16.msra.mxu0 %v259
    %279 = vmatprep.subr.bf16.mxu0 %v258
    %280 = vmatpush1.bf16.msra.mxu0 %v257
    %281 = vmatprep.subr.bf16.mxu0 %v256
    %282 = vmatpush1.bf16.msra.mxu0 %v255
    %283 = vmatprep.subr.bf16.mxu0 %v254
    %284 = vmatpush1.bf16.msra.mxu0 %v253
    %285 = vmatprep.subr.bf16.mxu0 %v252
    %286 = vmatpush1.bf16.msra.mxu0 %v251
    %287 = vmatprep.subr.bf16.mxu0 %v250
    %288 = vmatpush1.bf16.msra.mxu0 %v249
    %289 = vmatprep.subr.bf16.mxu0 %v248
    %290 = vmatpush1.bf16.msra.mxu0 %v247
    %291 = vmatprep.subr.bf16.mxu0 %v246
    %292 = vmatpush1.bf16.msra.mxu0 %v245
    %293 = vmatprep.subr.bf16.mxu0 0
    %294 = vmatpush2.bf16.msra.mxu0 0
    %295 = vmatprep.subr.bf16.mxu0 0
    %296 = vmatpush2.bf16.msra.mxu0 0
    %297 = vmatprep.subr.bf16.mxu0 0
    %298 = vmatpush2.bf16.msra.mxu0 0
    %299 = vmatprep.subr.bf16.mxu0 0
    %300 = vmatpush2.bf16.msra.mxu0 0
    %301 = vmatprep.subr.bf16.mxu0 0
    %302 = vmatpush2.bf16.msra.mxu0 0
    %303 = vmatprep.subr.bf16.mxu0 0
    %304 = vmatpush2.bf16.msra.mxu0 0
    %305 = vmatprep.subr.bf16.mxu0 0
    %306 = vmatpush2.bf16.msra.mxu0 0
    %307 = vmatprep.subr.bf16.mxu0 0
    %308 = vmatpush2.bf16.msra.mxu0 0
    %309 = vmatprep.mubr.bf16.mxu0 0
    %310 = vmatmul.mubr.bf16.gmra.mxu0 %v180
    %v311 = vpop.f32.mrf.mxu0
    %v312 = vadd.f32 0.0, %v311
    %v313 = vpop.f32.mrf.mxu0
    %v314 = vadd.f32 0.0, %v313
    %v315 = vpop.f32.mrf.mxu0
    %v316 = vpop.f32.mrf.mxu0
    %317 = vdwg.mxu0
    %v318 = vld [vmem:[#allocation12 + $0x1] sm:$0x3]
    %v319 = vld [vmem:[#allocation12 + $0x3] sm:$0x3]
    %v320 = vrot.slane %v312, 4
    %v321 = vadd.f32 %v312, %v320
    %v322 = vrot.slane %v321, 2
    %v323 = vadd.f32 %v321, %v322
    %v324 = vrot.slane %v323, 1
    %v325 = vadd.f32 %v323, %v324
    %v326 = vrot.slane %v314, 4
    %v327 = vadd.f32 %v314, %v326
    %v328 = vrot.slane %v327, 2
    %v329 = vadd.f32 %v327, %v328
    %v330 = vrot.slane %v329, 1
    %v331 = vadd.f32 %v329, %v330
    %v332 = vrcp.pop 8.0
    %v333 = vmul.f32 %v325, %v332
    %v334 = vmul.f32 %v331, %v332
    %v335 = vsub.f32 %v312, %v333
    %v336 = vsub.f32 %v314, %v334
    %v337 = vmul.f32 %v335, %v335
    %v338 = vmul.f32 %v336, %v336
    %v339 = vrot.slane %v337, 4
    %v340 = vadd.f32 %v337, %v339
    %v341 = vrot.slane %v340, 2
    %v342 = vadd.f32 %v340, %v341
    %v343 = vrot.slane %v342, 1
    %v344 = vadd.f32 %v342, %v343
    %v345 = vrot.slane %v338, 4
    %v346 = vadd.f32 %v338, %v345
    %v347 = vrot.slane %v346, 2
    %v348 = vadd.f32 %v346, %v347
    %v349 = vrot.slane %v348, 1
    %v350 = vadd.f32 %v348, %v349
    %v351 = vmul.f32 %v344, %v332
    %v352 = vmul.f32 %v350, %v332
    %v353 = vadd.f32 %v351, 0.8
    %v354 = vadd.f32 %v352, 0.8
    %v355 = vrsqrt.pop %v353
    %v356 = vrsqrt.pop %v354
    %v359 = vcombine.low %v355, %v356
    %v361 = vunpack.c.l.s4 1966171168
    %v362 = vunpack.c.0.s8 %v361
    %v363 = vlaneseq
    %v364 = vshrl.u32 %v363, 7
    %v365 = vsub.s32 %v362, %v364
    %v366 = vrot.slane %v359, %v365
    %v368 = vunpack.c.l.s4 1966171168
    %v369 = vunpack.c.0.s8 %v368
    %v370 = vlaneseq
    %v371 = vshrl.u32 %v370, 7
    %v372 = vsub.s32 %v369, %v371
    %v373 = vrot.slane %v366, %v372
    %v375 = vmul.f32 %v318, %v373
    %v377 = vlaneseq
    %v378 = vshrl.u32 %v377, 7
    %v379 = vsub.s32 0, %v378
    %v380 = vrot.slane %v375, %v379
    %v381 = vlaneseq
    %v382 = vshrl.u32 %v381, 7
    %v383 = vsub.s32 1, %v382
    %v384 = vrot.slane %v375, %v383
    %v387 = vmul.f32 %v335, %v380
    %v388 = vmul.f32 %v336, %v384
    %v390 = vlaneseq
    %v391 = vshrl.u32 %v390, 7
    %v392 = vsub.s32 0, %v391
    %v393 = vrot.slane %v319, %v392
    %v394 = vlaneseq
    %v395 = vshrl.u32 %v394, 7
    %v396 = vsub.s32 1, %v395
    %v397 = vrot.slane %v319, %v396
    %v400 = vadd.f32 %v387, %v393
    %v401 = vadd.f32 %v388, %v397
    %vm402 = vcmp.gt.f32.partialorder %v400, 0.0
    %vm403 = vcmp.gt.f32.partialorder %v401, 0.0
    %v404 = vmul.f32 %v400, 0.2
    %v405 = vmul.f32 %v401, 0.2
    %v406 = vsel %vm402, %v400, %v404
    %v407 = vsel %vm403, %v401, %v405
    %s408 = smul.u32 2, 32
    %s409 = smul.u32 %s408, 4
    %s410 = sshll.u32 %s409, 4
    %411 = dma.done [#allocation5], %s410
    %v412 = vpack.c.bf16 %v406, %v406
    %v413 = vpack.c.bf16 %v407, %v407
    %v414 = vld [vmem:[#allocation2] sm:$0xff]
    %v415 = vld [vmem:[#allocation2 + $0x8] sm:$0xff]
    %v416 = vld [vmem:[#allocation2 + $0x10] sm:$0xff]
    %v417 = vld [vmem:[#allocation2 + $0x18] sm:$0xff]
    %v418 = vld [vmem:[#allocation2 + $0x20] sm:$0xff]
    %v419 = vld [vmem:[#allocation2 + $0x28] sm:$0xff]
    %v420 = vld [vmem:[#allocation2 + $0x30] sm:$0xff]
    %v421 = vld [vmem:[#allocation2 + $0x38] sm:$0xff]
    %v422 = vld [vmem:[#allocation2 + $0x40] sm:$0xff]
    %v423 = vld [vmem:[#allocation2 + $0x48] sm:$0xff]
    %v424 = vld [vmem:[#allocation2 + $0x50] sm:$0xff]
    %v425 = vld [vmem:[#allocation2 + $0x58] sm:$0xff]
    %v426 = vld [vmem:[#allocation2 + $0x60] sm:$0xff]
    %v427 = vld [vmem:[#allocation2 + $0x68] sm:$0xff]
    %v428 = vld [vmem:[#allocation2 + $0x70] sm:$0xff]
    %v429 = vld [vmem:[#allocation2 + $0x78] sm:$0xff]
    %v430 = vld [vmem:[#allocation2 + $0x80] sm:$0xff]
    %v431 = vld [vmem:[#allocation2 + $0x88] sm:$0xff]
    %v432 = vld [vmem:[#allocation2 + $0x90] sm:$0xff]
    %v433 = vld [vmem:[#allocation2 + $0x98] sm:$0xff]
    %v434 = vld [vmem:[#allocation2 + $0xa0] sm:$0xff]
    %v435 = vld [vmem:[#allocation2 + $0xa8] sm:$0xff]
    %v436 = vld [vmem:[#allocation2 + $0xb0] sm:$0xff]
    %v437 = vld [vmem:[#allocation2 + $0xb8] sm:$0xff]
    %v438 = vld [vmem:[#allocation2 + $0xc0] sm:$0xff]
    %v439 = vld [vmem:[#allocation2 + $0xc8] sm:$0xff]
    %v440 = vld [vmem:[#allocation2 + $0xd0] sm:$0xff]
    %v441 = vld [vmem:[#allocation2 + $0xd8] sm:$0xff]
    %v442 = vld [vmem:[#allocation2 + $0xe0] sm:$0xff]
    %v443 = vld [vmem:[#allocation2 + $0xe8] sm:$0xff]
    %v444 = vld [vmem:[#allocation2 + $0xf0] sm:$0xff]
    %v445 = vld [vmem:[#allocation2 + $0xf8] sm:$0xff]
    %v446 = vunpack.c.l.s8.bf16 %v414
    %v447 = vunpack.c.l.s8.bf16 %v415
    %v448 = vunpack.c.l.s8.bf16 %v416
    %v449 = vunpack.c.l.s8.bf16 %v417
    %v450 = vunpack.c.h.s8.bf16 %v414
    %v451 = vunpack.c.h.s8.bf16 %v415
    %v452 = vunpack.c.h.s8.bf16 %v416
    %v453 = vunpack.c.h.s8.bf16 %v417
    %v454 = vunpack.c.l.s8.bf16 %v418
    %v455 = vunpack.c.l.s8.bf16 %v419
    %v456 = vunpack.c.l.s8.bf16 %v420
    %v457 = vunpack.c.l.s8.bf16 %v421
    %v458 = vunpack.c.h.s8.bf16 %v418
    %v459 = vunpack.c.h.s8.bf16 %v419
    %v460 = vunpack.c.h.s8.bf16 %v420
    %v461 = vunpack.c.h.s8.bf16 %v421
    %v462 = vunpack.c.l.s8.bf16 %v422
    %v463 = vunpack.c.l.s8.bf16 %v423
    %v464 = vunpack.c.l.s8.bf16 %v424
    %v465 = vunpack.c.l.s8.bf16 %v425
    %v466 = vunpack.c.h.s8.bf16 %v422
    %v467 = vunpack.c.h.s8.bf16 %v423
    %v468 = vunpack.c.h.s8.bf16 %v424
    %v469 = vunpack.c.h.s8.bf16 %v425
    %v470 = vunpack.c.l.s8.bf16 %v426
    %v471 = vunpack.c.l.s8.bf16 %v427
    %v472 = vunpack.c.l.s8.bf16 %v428
    %v473 = vunpack.c.l.s8.bf16 %v429
    %v474 = vunpack.c.h.s8.bf16 %v426
    %v475 = vunpack.c.h.s8.bf16 %v427
    %v476 = vunpack.c.h.s8.bf16 %v428
    %v477 = vunpack.c.h.s8.bf16 %v429
    %v478 = vunpack.c.l.s8.bf16 %v430
    %v479 = vunpack.c.l.s8.bf16 %v431
    %v480 = vunpack.c.l.s8.bf16 %v432
    %v481 = vunpack.c.l.s8.bf16 %v433
    %v482 = vunpack.c.h.s8.bf16 %v430
    %v483 = vunpack.c.h.s8.bf16 %v431
    %v484 = vunpack.c.h.s8.bf16 %v432
    %v485 = vunpack.c.h.s8.bf16 %v433
    %v486 = vunpack.c.l.s8.bf16 %v434
    %v487 = vunpack.c.l.s8.bf16 %v435
    %v488 = vunpack.c.l.s8.bf16 %v436
    %v489 = vunpack.c.l.s8.bf16 %v437
    %v490 = vunpack.c.h.s8.bf16 %v434
    %v491 = vunpack.c.h.s8.bf16 %v435
    %v492 = vunpack.c.h.s8.bf16 %v436
    %v493 = vunpack.c.h.s8.bf16 %v437
    %v494 = vunpack.c.l.s8.bf16 %v438
    %v495 = vunpack.c.l.s8.bf16 %v439
    %v496 = vunpack.c.l.s8.bf16 %v440
    %v497 = vunpack.c.l.s8.bf16 %v441
    %v498 = vunpack.c.h.s8.bf16 %v438
    %v499 = vunpack.c.h.s8.bf16 %v439
    %v500 = vunpack.c.h.s8.bf16 %v440
    %v501 = vunpack.c.h.s8.bf16 %v441
    %v502 = vunpack.c.l.s8.bf16 %v442
    %v503 = vunpack.c.l.s8.bf16 %v443
    %v504 = vunpack.c.l.s8.bf16 %v444
    %v505 = vunpack.c.l.s8.bf16 %v445
    %v506 = vunpack.c.h.s8.bf16 %v442
    %v507 = vunpack.c.h.s8.bf16 %v443
    %v508 = vunpack.c.h.s8.bf16 %v444
    %v509 = vunpack.c.h.s8.bf16 %v445
    %510 = vmatprep.subr.bf16.mxu0 %v475
    %511 = vmatpush1.bf16.msra.mxu0 %v474
    %512 = vmatprep.subr.bf16.mxu0 %v471
    %513 = vmatpush1.bf16.msra.mxu0 %v470
    %514 = vmatprep.subr.bf16.mxu0 %v467
    %515 = vmatpush1.bf16.msra.mxu0 %v466
    %516 = vmatprep.subr.bf16.mxu0 %v463
    %517 = vmatpush1.bf16.msra.mxu0 %v462
    %518 = vmatprep.subr.bf16.mxu0 %v459
    %519 = vmatpush1.bf16.msra.mxu0 %v458
    %520 = vmatprep.subr.bf16.mxu0 %v455
    %521 = vmatpush1.bf16.msra.mxu0 %v454
    %522 = vmatprep.subr.bf16.mxu0 %v451
    %523 = vmatpush1.bf16.msra.mxu0 %v450
    %524 = vmatprep.subr.bf16.mxu0 %v447
    %525 = vmatpush1.bf16.msra.mxu0 %v446
    %526 = vmatprep.subr.bf16.mxu0 %v507
    %527 = vmatpush2.bf16.msra.mxu0 %v506
    %528 = vmatprep.subr.bf16.mxu0 %v503
    %529 = vmatpush2.bf16.msra.mxu0 %v502
    %530 = vmatprep.subr.bf16.mxu0 %v499
    %531 = vmatpush2.bf16.msra.mxu0 %v498
    %532 = vmatprep.subr.bf16.mxu0 %v495
    %533 = vmatpush2.bf16.msra.mxu0 %v494
    %534 = vmatprep.subr.bf16.mxu0 %v491
    %535 = vmatpush2.bf16.msra.mxu0 %v490
    %536 = vmatprep.subr.bf16.mxu0 %v487
    %537 = vmatpush2.bf16.msra.mxu0 %v486
    %538 = vmatprep.subr.bf16.mxu0 %v483
    %539 = vmatpush2.bf16.msra.mxu0 %v482
    %540 = vmatprep.subr.bf16.mxu0 %v479
    %541 = vmatpush2.bf16.msra.mxu0 %v478
    %542 = vmatprep.mubr.bf16.mxu0 %v413
    %543 = vmatmul.mubr.bf16.gmra.mxu0 %v412
    %v544 = vpop.f32.mrf.mxu0
    %v545 = vadd.f32 0.0, %v544
    %v546 = vpop.f32.mrf.mxu0
    %v547 = vadd.f32 0.0, %v546
    %v548 = vpop.f32.mrf.mxu0
    %v549 = vpop.f32.mrf.mxu0
    %550 = vdwg.mxu0
    %551 = vmatprep.subr.bf16.mxu0 %v477
    %552 = vmatpush1.bf16.msra.mxu0 %v476
    %553 = vmatprep.subr.bf16.mxu0 %v473
    %554 = vmatpush1.bf16.msra.mxu0 %v472
    %555 = vmatprep.subr.bf16.mxu0 %v469
    %556 = vmatpush1.bf16.msra.mxu0 %v468
    %557 = vmatprep.subr.bf16.mxu0 %v465
    %558 = vmatpush1.bf16.msra.mxu0 %v464
    %559 = vmatprep.subr.bf16.mxu0 %v461
    %560 = vmatpush1.bf16.msra.mxu0 %v460
    %561 = vmatprep.subr.bf16.mxu0 %v457
    %562 = vmatpush1.bf16.msra.mxu0 %v456
    %563 = vmatprep.subr.bf16.mxu0 %v453
    %564 = vmatpush1.bf16.msra.mxu0 %v452
    %565 = vmatprep.subr.bf16.mxu0 %v449
    %566 = vmatpush1.bf16.msra.mxu0 %v448
    %567 = vmatprep.subr.bf16.mxu0 %v509
    %568 = vmatpush2.bf16.msra.mxu0 %v508
    %569 = vmatprep.subr.bf16.mxu0 %v505
    %570 = vmatpush2.bf16.msra.mxu0 %v504
    %571 = vmatprep.subr.bf16.mxu0 %v501
    %572 = vmatpush2.bf16.msra.mxu0 %v500
    %573 = vmatprep.subr.bf16.mxu0 %v497
    %574 = vmatpush2.bf16.msra.mxu0 %v496
    %575 = vmatprep.subr.bf16.mxu0 %v493
    %576 = vmatpush2.bf16.msra.mxu0 %v492
    %577 = vmatprep.subr.bf16.mxu0 %v489
    %578 = vmatpush2.bf16.msra.mxu0 %v488
    %579 = vmatprep.subr.bf16.mxu0 %v485
    %580 = vmatpush2.bf16.msra.mxu0 %v484
    %581 = vmatprep.subr.bf16.mxu0 %v481
    %582 = vmatpush2.bf16.msra.mxu0 %v480
    %583 = vmatprep.mubr.bf16.mxu0 %v413
    %584 = vmatmul.mubr.bf16.gmra.mxu0 %v412
    %v585 = vpop.f32.mrf.mxu0
    %v586 = vadd.f32 0.0, %v585
    %v587 = vpop.f32.mrf.mxu0
    %v588 = vadd.f32 0.0, %v587
    %v589 = vpop.f32.mrf.mxu0
    %v590 = vpop.f32.mrf.mxu0
    %591 = vdwg.mxu0
    %v592 = vld [vmem:[#allocation12 + $0x1f] sm:$0xf]
    %v594 = vlaneseq
    %v595 = vshrl.u32 %v594, 7
    %v596 = vsub.s32 0, %v595
    %v597 = vrot.slane %v592, %v596
    %v598 = vlaneseq
    %v599 = vshrl.u32 %v598, 7
    %v600 = vsub.s32 1, %v599
    %v601 = vrot.slane %v592, %v600
    %v602 = vlaneseq
    %v603 = vshrl.u32 %v602, 7
    %v604 = vsub.s32 2, %v603
    %v605 = vrot.slane %v592, %v604
    %v606 = vlaneseq
    %v607 = vshrl.u32 %v606, 7
    %v608 = vsub.s32 3, %v607
    %v609 = vrot.slane %v592, %v608
    %v614 = vmul.f32 %v545, %v597
    %v615 = vmul.f32 %v547, %v601
    %v616 = vmul.f32 %v586, %v605
    %v617 = vmul.f32 %v588, %v609
    %v618 = vld [vmem:[#allocation12 + $0x5] sm:$0xf]
    %v619 = vld [vmem:[#allocation12 + $0x9] sm:$0xf]
    %v620 = vrot.slane %v614, 4
    %v621 = vadd.f32 %v614, %v620
    %v622 = vrot.slane %v621, 2
    %v623 = vadd.f32 %v621, %v622
    %v624 = vrot.slane %v623, 1
    %v625 = vadd.f32 %v623, %v624
    %v626 = vrot.slane %v615, 4
    %v627 = vadd.f32 %v615, %v626
    %v628 = vrot.slane %v627, 2
    %v629 = vadd.f32 %v627, %v628
    %v630 = vrot.slane %v629, 1
    %v631 = vadd.f32 %v629, %v630
    %v632 = vrot.slane %v616, 4
    %v633 = vadd.f32 %v616, %v632
    %v634 = vrot.slane %v633, 2
    %v635 = vadd.f32 %v633, %v634
    %v636 = vrot.slane %v635, 1
    %v637 = vadd.f32 %v635, %v636
    %v638 = vrot.slane %v617, 4
    %v639 = vadd.f32 %v617, %v638
    %v640 = vrot.slane %v639, 2
    %v641 = vadd.f32 %v639, %v640
    %v642 = vrot.slane %v641, 1
    %v643 = vadd.f32 %v641, %v642
    %v644 = vmul.f32 %v625, %v332
    %v645 = vmul.f32 %v631, %v332
    %v646 = vmul.f32 %v637, %v332
    %v647 = vmul.f32 %v643, %v332
    %v648 = vsub.f32 %v614, %v644
    %v649 = vsub.f32 %v615, %v645
    %v650 = vsub.f32 %v616, %v646
    %v651 = vsub.f32 %v617, %v647
    %v652 = vmul.f32 %v648, %v648
    %v653 = vmul.f32 %v649, %v649
    %v654 = vmul.f32 %v650, %v650
    %v655 = vmul.f32 %v651, %v651
    %v656 = vrot.slane %v652, 4
    %v657 = vadd.f32 %v652, %v656
    %v658 = vrot.slane %v657, 2
    %v659 = vadd.f32 %v657, %v658
    %v660 = vrot.slane %v659, 1
    %v661 = vadd.f32 %v659, %v660
    %v662 = vrot.slane %v653, 4
    %v663 = vadd.f32 %v653, %v662
    %v664 = vrot.slane %v663, 2
    %v665 = vadd.f32 %v663, %v664
    %v666 = vrot.slane %v665, 1
    %v667 = vadd.f32 %v665, %v666
    %v668 = vrot.slane %v654, 4
    %v669 = vadd.f32 %v654, %v668
    %v670 = vrot.slane %v669, 2
    %v671 = vadd.f32 %v669, %v670
    %v672 = vrot.slane %v671, 1
    %v673 = vadd.f32 %v671, %v672
    %v674 = vrot.slane %v655, 4
    %v675 = vadd.f32 %v655, %v674
    %v676 = vrot.slane %v675, 2
    %v677 = vadd.f32 %v675, %v676
    %v678 = vrot.slane %v677, 1
    %v679 = vadd.f32 %v677, %v678
    %v680 = vmul.f32 %v661, %v332
    %v681 = vmul.f32 %v667, %v332
    %v682 = vmul.f32 %v673, %v332
    %v683 = vmul.f32 %v679, %v332
    %v684 = vadd.f32 %v680, 0.8
    %v685 = vadd.f32 %v681, 0.8
    %v686 = vadd.f32 %v682, 0.8
    %v687 = vadd.f32 %v683, 0.8
    %v688 = vrsqrt.pop %v684
    %v689 = vrsqrt.pop %v685
    %v690 = vrsqrt.pop %v686
    %v691 = vrsqrt.pop %v687
    %v696 = vcombine.low %v688, %v689
    %v697 = vcombine.low %v690, %v691
    %v699 = vunpack.c.l.s4 1966171168
    %v700 = vunpack.c.0.s8 %v699
    %v701 = vlaneseq
    %v702 = vshrl.u32 %v701, 7
    %v703 = vsub.s32 %v700, %v702
    %v704 = vrot.slane %v696, %v703
    %v706 = vunpack.c.l.s4 1966171168
    %v707 = vunpack.c.0.s8 %v706
    %v708 = vlaneseq
    %v709 = vshrl.u32 %v708, 7
    %v710 = vsub.s32 %v707, %v709
    %v711 = vrot.slane %v697, %v710
    %v712 = vcombine.low %v704, %v711
    %v714 = vunpack.c.l.s4 1966171168
    %v715 = vunpack.c.0.s8 %v714
    %v716 = vlaneseq
    %v717 = vshrl.u32 %v716, 7
    %v718 = vsub.s32 %v715, %v717
    %v719 = vrot.slane %v712, %v718
    %v721 = vmul.f32 %v618, %v719
    %v723 = vlaneseq
    %v724 = vshrl.u32 %v723, 7
    %v725 = vsub.s32 0, %v724
    %v726 = vrot.slane %v721, %v725
    %v727 = vlaneseq
    %v728 = vshrl.u32 %v727, 7
    %v729 = vsub.s32 1, %v728
    %v730 = vrot.slane %v721, %v729
    %v731 = vlaneseq
    %v732 = vshrl.u32 %v731, 7
    %v733 = vsub.s32 2, %v732
    %v734 = vrot.slane %v721, %v733
    %v735 = vlaneseq
    %v736 = vshrl.u32 %v735, 7
    %v737 = vsub.s32 3, %v736
    %v738 = vrot.slane %v721, %v737
    %v743 = vmul.f32 %v648, %v726
    %v744 = vmul.f32 %v649, %v730
    %v745 = vmul.f32 %v650, %v734
    %v746 = vmul.f32 %v651, %v738
    %v748 = vlaneseq
    %v749 = vshrl.u32 %v748, 7
    %v750 = vsub.s32 0, %v749
    %v751 = vrot.slane %v619, %v750
    %v752 = vlaneseq
    %v753 = vshrl.u32 %v752, 7
    %v754 = vsub.s32 1, %v753
    %v755 = vrot.slane %v619, %v754
    %v756 = vlaneseq
    %v757 = vshrl.u32 %v756, 7
    %v758 = vsub.s32 2, %v757
    %v759 = vrot.slane %v619, %v758
    %v760 = vlaneseq
    %v761 = vshrl.u32 %v760, 7
    %v762 = vsub.s32 3, %v761
    %v763 = vrot.slane %v619, %v762
    %v768 = vadd.f32 %v743, %v751
    %v769 = vadd.f32 %v744, %v755
    %v770 = vadd.f32 %v745, %v759
    %v771 = vadd.f32 %v746, %v763
    %vm772 = vcmp.gt.f32.partialorder %v768, 0.0
    %vm773 = vcmp.gt.f32.partialorder %v769, 0.0
    %vm774 = vcmp.gt.f32.partialorder %v770, 0.0
    %vm775 = vcmp.gt.f32.partialorder %v771, 0.0
    %v776 = vmul.f32 %v768, 0.2
    %v777 = vmul.f32 %v769, 0.2
    %v778 = vmul.f32 %v770, 0.2
    %v779 = vmul.f32 %v771, 0.2
    %v780 = vsel %vm772, %v768, %v776
    %v781 = vsel %vm773, %v769, %v777
    %v782 = vsel %vm774, %v770, %v778
    %v783 = vsel %vm775, %v771, %v779
    %s784 = smul.u32 2, 64
    %s785 = smul.u32 %s784, 8
    %s786 = sshll.u32 %s785, 4
    %787 = dma.done %s84, %s786
    %v788 = vpack.c.bf16 %v780, %v780
    %v789 = vpack.c.bf16 %v781, %v781
    %v790 = vpack.c.bf16 %v782, %v782
    %v791 = vpack.c.bf16 %v783, %v783
    %v792 = vld [vmem:[#allocation3] sm:$0xff]
    %v793 = vld [vmem:[#allocation3 + $0x8] sm:$0xff]
    %v794 = vld [vmem:[#allocation3 + $0x10] sm:$0xff]
    %v795 = vld [vmem:[#allocation3 + $0x18] sm:$0xff]
    %v796 = vld [vmem:[#allocation3 + $0x20] sm:$0xff]
    %v797 = vld [vmem:[#allocation3 + $0x28] sm:$0xff]
    %v798 = vld [vmem:[#allocation3 + $0x30] sm:$0xff]
    %v799 = vld [vmem:[#allocation3 + $0x38] sm:$0xff]
    %v800 = vld [vmem:[#allocation3 + $0x40] sm:$0xff]
    %v801 = vld [vmem:[#allocation3 + $0x48] sm:$0xff]
    %v802 = vld [vmem:[#allocation3 + $0x50] sm:$0xff]
    %v803 = vld [vmem:[#allocation3 + $0x58] sm:$0xff]
    %v804 = vld [vmem:[#allocation3 + $0x60] sm:$0xff]
    %v805 = vld [vmem:[#allocation3 + $0x68] sm:$0xff]
    %v806 = vld [vmem:[#allocation3 + $0x70] sm:$0xff]
    %v807 = vld [vmem:[#allocation3 + $0x78] sm:$0xff]
    %v808 = vld [vmem:[#allocation3 + $0x80] sm:$0xff]
    %v809 = vld [vmem:[#allocation3 + $0x88] sm:$0xff]
    %v810 = vld [vmem:[#allocation3 + $0x90] sm:$0xff]
    %v811 = vld [vmem:[#allocation3 + $0x98] sm:$0xff]
    %v812 = vld [vmem:[#allocation3 + $0xa0] sm:$0xff]
    %v813 = vld [vmem:[#allocation3 + $0xa8] sm:$0xff]
    %v814 = vld [vmem:[#allocation3 + $0xb0] sm:$0xff]
    %v815 = vld [vmem:[#allocation3 + $0xb8] sm:$0xff]
    %v816 = vld [vmem:[#allocation3 + $0xc0] sm:$0xff]
    %v817 = vld [vmem:[#allocation3 + $0xc8] sm:$0xff]
    %v818 = vld [vmem:[#allocation3 + $0xd0] sm:$0xff]
    %v819 = vld [vmem:[#allocation3 + $0xd8] sm:$0xff]
    %v820 = vld [vmem:[#allocation3 + $0xe0] sm:$0xff]
    %v821 = vld [vmem:[#allocation3 + $0xe8] sm:$0xff]
    %v822 = vld [vmem:[#allocation3 + $0xf0] sm:$0xff]
    %v823 = vld [vmem:[#allocation3 + $0xf8] sm:$0xff]
    %v824 = vld [vmem:[#allocation3 + $0x100] sm:$0xff]
    %v825 = vld [vmem:[#allocation3 + $0x108] sm:$0xff]
    %v826 = vld [vmem:[#allocation3 + $0x110] sm:$0xff]
    %v827 = vld [vmem:[#allocation3 + $0x118] sm:$0xff]
    %v828 = vld [vmem:[#allocation3 + $0x120] sm:$0xff]
    %v829 = vld [vmem:[#allocation3 + $0x128] sm:$0xff]
    %v830 = vld [vmem:[#allocation3 + $0x130] sm:$0xff]
    %v831 = vld [vmem:[#allocation3 + $0x138] sm:$0xff]
    %v832 = vld [vmem:[#allocation3 + $0x140] sm:$0xff]
    %v833 = vld [vmem:[#allocation3 + $0x148] sm:$0xff]
    %v834 = vld [vmem:[#allocation3 + $0x150] sm:$0xff]
    %v835 = vld [vmem:[#allocation3 + $0x158] sm:$0xff]
    %v836 = vld [vmem:[#allocation3 + $0x160] sm:$0xff]
    %v837 = vld [vmem:[#allocation3 + $0x168] sm:$0xff]
    %v838 = vld [vmem:[#allocation3 + $0x170] sm:$0xff]
    %v839 = vld [vmem:[#allocation3 + $0x178] sm:$0xff]
    %v840 = vld [vmem:[#allocation3 + $0x180] sm:$0xff]
    %v841 = vld [vmem:[#allocation3 + $0x188] sm:$0xff]
    %v842 = vld [vmem:[#allocation3 + $0x190] sm:$0xff]
    %v843 = vld [vmem:[#allocation3 + $0x198] sm:$0xff]
    %v844 = vld [vmem:[#allocation3 + $0x1a0] sm:$0xff]
    %v845 = vld [vmem:[#allocation3 + $0x1a8] sm:$0xff]
    %v846 = vld [vmem:[#allocation3 + $0x1b0] sm:$0xff]
    %v847 = vld [vmem:[#allocation3 + $0x1b8] sm:$0xff]
    %v848 = vld [vmem:[#allocation3 + $0x1c0] sm:$0xff]
    %v849 = vld [vmem:[#allocation3 + $0x1c8] sm:$0xff]
    %v850 = vld [vmem:[#allocation3 + $0x1d0] sm:$0xff]
    %v851 = vld [vmem:[#allocation3 + $0x1d8] sm:$0xff]
    %v852 = vld [vmem:[#allocation3 + $0x1e0] sm:$0xff]
    %v853 = vld [vmem:[#allocation3 + $0x1e8] sm:$0xff]
    %v854 = vld [vmem:[#allocation3 + $0x1f0] sm:$0xff]
    %v855 = vld [vmem:[#allocation3 + $0x1f8] sm:$0xff]
    %v856 = vld [vmem:[#allocation3 + $0x200] sm:$0xff]
    %v857 = vld [vmem:[#allocation3 + $0x208] sm:$0xff]
    %v858 = vld [vmem:[#allocation3 + $0x210] sm:$0xff]
    %v859 = vld [vmem:[#allocation3 + $0x218] sm:$0xff]
    %v860 = vld [vmem:[#allocation3 + $0x220] sm:$0xff]
    %v861 = vld [vmem:[#allocation3 + $0x228] sm:$0xff]
    %v862 = vld [vmem:[#allocation3 + $0x230] sm:$0xff]
    %v863 = vld [vmem:[#allocation3 + $0x238] sm:$0xff]
    %v864 = vld [vmem:[#allocation3 + $0x240] sm:$0xff]
    %v865 = vld [vmem:[#allocation3 + $0x248] sm:$0xff]
    %v866 = vld [vmem:[#allocation3 + $0x250] sm:$0xff]
    %v867 = vld [vmem:[#allocation3 + $0x258] sm:$0xff]
    %v868 = vld [vmem:[#allocation3 + $0x260] sm:$0xff]
    %v869 = vld [vmem:[#allocation3 + $0x268] sm:$0xff]
    %v870 = vld [vmem:[#allocation3 + $0x270] sm:$0xff]
    %v871 = vld [vmem:[#allocation3 + $0x278] sm:$0xff]
    %v872 = vld [vmem:[#allocation3 + $0x280] sm:$0xff]
    %v873 = vld [vmem:[#allocation3 + $0x288] sm:$0xff]
    %v874 = vld [vmem:[#allocation3 + $0x290] sm:$0xff]
    %v875 = vld [vmem:[#allocation3 + $0x298] sm:$0xff]
    %v876 = vld [vmem:[#allocation3 + $0x2a0] sm:$0xff]
    %v877 = vld [vmem:[#allocation3 + $0x2a8] sm:$0xff]
    %v878 = vld [vmem:[#allocation3 + $0x2b0] sm:$0xff]
    %v879 = vld [vmem:[#allocation3 + $0x2b8] sm:$0xff]
    %v880 = vld [vmem:[#allocation3 + $0x2c0] sm:$0xff]
    %v881 = vld [vmem:[#allocation3 + $0x2c8] sm:$0xff]
    %v882 = vld [vmem:[#allocation3 + $0x2d0] sm:$0xff]
    %v883 = vld [vmem:[#allocation3 + $0x2d8] sm:$0xff]
    %v884 = vld [vmem:[#allocation3 + $0x2e0] sm:$0xff]
    %v885 = vld [vmem:[#allocation3 + $0x2e8] sm:$0xff]
    %v886 = vld [vmem:[#allocation3 + $0x2f0] sm:$0xff]
    %v887 = vld [vmem:[#allocation3 + $0x2f8] sm:$0xff]
    %v888 = vld [vmem:[#allocation3 + $0x300] sm:$0xff]
    %v889 = vld [vmem:[#allocation3 + $0x308] sm:$0xff]
    %v890 = vld [vmem:[#allocation3 + $0x310] sm:$0xff]
    %v891 = vld [vmem:[#allocation3 + $0x318] sm:$0xff]
    %v892 = vld [vmem:[#allocation3 + $0x320] sm:$0xff]
    %v893 = vld [vmem:[#allocation3 + $0x328] sm:$0xff]
    %v894 = vld [vmem:[#allocation3 + $0x330] sm:$0xff]
    %v895 = vld [vmem:[#allocation3 + $0x338] sm:$0xff]
    %v896 = vld [vmem:[#allocation3 + $0x340] sm:$0xff]
    %v897 = vld [vmem:[#allocation3 + $0x348] sm:$0xff]
    %v898 = vld [vmem:[#allocation3 + $0x350] sm:$0xff]
    %v899 = vld [vmem:[#allocation3 + $0x358] sm:$0xff]
    %v900 = vld [vmem:[#allocation3 + $0x360] sm:$0xff]
    %v901 = vld [vmem:[#allocation3 + $0x368] sm:$0xff]
    %v902 = vld [vmem:[#allocation3 + $0x370] sm:$0xff]
    %v903 = vld [vmem:[#allocation3 + $0x378] sm:$0xff]
    %v904 = vld [vmem:[#allocation3 + $0x380] sm:$0xff]
    %v905 = vld [vmem:[#allocation3 + $0x388] sm:$0xff]
    %v906 = vld [vmem:[#allocation3 + $0x390] sm:$0xff]
    %v907 = vld [vmem:[#allocation3 + $0x398] sm:$0xff]
    %v908 = vld [vmem:[#allocation3 + $0x3a0] sm:$0xff]
    %v909 = vld [vmem:[#allocation3 + $0x3a8] sm:$0xff]
    %v910 = vld [vmem:[#allocation3 + $0x3b0] sm:$0xff]
    %v911 = vld [vmem:[#allocation3 + $0x3b8] sm:$0xff]
    %v912 = vld [vmem:[#allocation3 + $0x3c0] sm:$0xff]
    %v913 = vld [vmem:[#allocation3 + $0x3c8] sm:$0xff]
    %v914 = vld [vmem:[#allocation3 + $0x3d0] sm:$0xff]
    %v915 = vld [vmem:[#allocation3 + $0x3d8] sm:$0xff]
    %v916 = vld [vmem:[#allocation3 + $0x3e0] sm:$0xff]
    %v917 = vld [vmem:[#allocation3 + $0x3e8] sm:$0xff]
    %v918 = vld [vmem:[#allocation3 + $0x3f0] sm:$0xff]
    %v919 = vld [vmem:[#allocation3 + $0x3f8] sm:$0xff]
    %v920 = vunpack.c.l.s8.bf16 %v792
    %v921 = vunpack.c.l.s8.bf16 %v793
    %v922 = vunpack.c.l.s8.bf16 %v794
    %v923 = vunpack.c.l.s8.bf16 %v795
    %v924 = vunpack.c.l.s8.bf16 %v796
    %v925 = vunpack.c.l.s8.bf16 %v797
    %v926 = vunpack.c.l.s8.bf16 %v798
    %v927 = vunpack.c.l.s8.bf16 %v799
    %v928 = vunpack.c.h.s8.bf16 %v792
    %v929 = vunpack.c.h.s8.bf16 %v793
    %v930 = vunpack.c.h.s8.bf16 %v794
    %v931 = vunpack.c.h.s8.bf16 %v795
    %v932 = vunpack.c.h.s8.bf16 %v796
    %v933 = vunpack.c.h.s8.bf16 %v797
    %v934 = vunpack.c.h.s8.bf16 %v798
    %v935 = vunpack.c.h.s8.bf16 %v799
    %v936 = vunpack.c.l.s8.bf16 %v800
    %v937 = vunpack.c.l.s8.bf16 %v801
    %v938 = vunpack.c.l.s8.bf16 %v802
    %v939 = vunpack.c.l.s8.bf16 %v803
    %v940 = vunpack.c.l.s8.bf16 %v804
    %v941 = vunpack.c.l.s8.bf16 %v805
    %v942 = vunpack.c.l.s8.bf16 %v806
    %v943 = vunpack.c.l.s8.bf16 %v807
    %v944 = vunpack.c.h.s8.bf16 %v800
    %v945 = vunpack.c.h.s8.bf16 %v801
    %v946 = vunpack.c.h.s8.bf16 %v802
    %v947 = vunpack.c.h.s8.bf16 %v803
    %v948 = vunpack.c.h.s8.bf16 %v804
    %v949 = vunpack.c.h.s8.bf16 %v805
    %v950 = vunpack.c.h.s8.bf16 %v806
    %v951 = vunpack.c.h.s8.bf16 %v807
    %v952 = vunpack.c.l.s8.bf16 %v808
    %v953 = vunpack.c.l.s8.bf16 %v809
    %v954 = vunpack.c.l.s8.bf16 %v810
    %v955 = vunpack.c.l.s8.bf16 %v811
    %v956 = vunpack.c.l.s8.bf16 %v812
    %v957 = vunpack.c.l.s8.bf16 %v813
    %v958 = vunpack.c.l.s8.bf16 %v814
    %v959 = vunpack.c.l.s8.bf16 %v815
    %v960 = vunpack.c.h.s8.bf16 %v808
    %v961 = vunpack.c.h.s8.bf16 %v809
    %v962 = vunpack.c.h.s8.bf16 %v810
    %v963 = vunpack.c.h.s8.bf16 %v811
    %v964 = vunpack.c.h.s8.bf16 %v812
    %v965 = vunpack.c.h.s8.bf16 %v813
    %v966 = vunpack.c.h.s8.bf16 %v814
    %v967 = vunpack.c.h.s8.bf16 %v815
    %v968 = vunpack.c.l.s8.bf16 %v816
    %v969 = vunpack.c.l.s8.bf16 %v817
    %v970 = vunpack.c.l.s8.bf16 %v818
    %v971 = vunpack.c.l.s8.bf16 %v819
    %v972 = vunpack.c.l.s8.bf16 %v820
    %v973 = vunpack.c.l.s8.bf16 %v821
    %v974 = vunpack.c.l.s8.bf16 %v822
    %v975 = vunpack.c.l.s8.bf16 %v823
    %v976 = vunpack.c.h.s8.bf16 %v816
    %v977 = vunpack.c.h.s8.bf16 %v817
    %v978 = vunpack.c.h.s8.bf16 %v818
    %v979 = vunpack.c.h.s8.bf16 %v819
    %v980 = vunpack.c.h.s8.bf16 %v820
    %v981 = vunpack.c.h.s8.bf16 %v821
    %v982 = vunpack.c.h.s8.bf16 %v822
    %v983 = vunpack.c.h.s8.bf16 %v823
    %v984 = vunpack.c.l.s8.bf16 %v824
    %v985 = vunpack.c.l.s8.bf16 %v825
    %v986 = vunpack.c.l.s8.bf16 %v826
    %v987 = vunpack.c.l.s8.bf16 %v827
    %v988 = vunpack.c.l.s8.bf16 %v828
    %v989 = vunpack.c.l.s8.bf16 %v829
    %v990 = vunpack.c.l.s8.bf16 %v830
    %v991 = vunpack.c.l.s8.bf16 %v831
    %v992 = vunpack.c.h.s8.bf16 %v824
    %v993 = vunpack.c.h.s8.bf16 %v825
    %v994 = vunpack.c.h.s8.bf16 %v826
    %v995 = vunpack.c.h.s8.bf16 %v827
    %v996 = vunpack.c.h.s8.bf16 %v828
    %v997 = vunpack.c.h.s8.bf16 %v829
    %v998 = vunpack.c.h.s8.bf16 %v830
    %v999 = vunpack.c.h.s8.bf16 %v831
    %v1000 = vunpack.c.l.s8.bf16 %v832
    %v1001 = vunpack.c.l.s8.bf16 %v833
    %v1002 = vunpack.c.l.s8.bf16 %v834
    %v1003 = vunpack.c.l.s8.bf16 %v835
    %v1004 = vunpack.c.l.s8.bf16 %v836
    %v1005 = vunpack.c.l.s8.bf16 %v837
    %v1006 = vunpack.c.l.s8.bf16 %v838
    %v1007 = vunpack.c.l.s8.bf16 %v839
    %v1008 = vunpack.c.h.s8.bf16 %v832
    %v1009 = vunpack.c.h.s8.bf16 %v833
    %v1010 = vunpack.c.h.s8.bf16 %v834
    %v1011 = vunpack.c.h.s8.bf16 %v835
    %v1012 = vunpack.c.h.s8.bf16 %v836
    %v1013 = vunpack.c.h.s8.bf16 %v837
    %v1014 = vunpack.c.h.s8.bf16 %v838
    %v1015 = vunpack.c.h.s8.bf16 %v839
    %v1016 = vunpack.c.l.s8.bf16 %v840
    %v1017 = vunpack.c.l.s8.bf16 %v841
    %v1018 = vunpack.c.l.s8.bf16 %v842
    %v1019 = vunpack.c.l.s8.bf16 %v843
    %v1020 = vunpack.c.l.s8.bf16 %v844
    %v1021 = vunpack.c.l.s8.bf16 %v845
    %v1022 = vunpack.c.l.s8.bf16 %v846
    %v1023 = vunpack.c.l.s8.bf16 %v847
    %v1024 = vunpack.c.h.s8.bf16 %v840
    %v1025 = vunpack.c.h.s8.bf16 %v841
    %v1026 = vunpack.c.h.s8.bf16 %v842
    %v1027 = vunpack.c.h.s8.bf16 %v843
    %v1028 = vunpack.c.h.s8.bf16 %v844
    %v1029 = vunpack.c.h.s8.bf16 %v845
    %v1030 = vunpack.c.h.s8.bf16 %v846
    %v1031 = vunpack.c.h.s8.bf16 %v847
    %v1032 = vunpack.c.l.s8.bf16 %v848
    %v1033 = vunpack.c.l.s8.bf16 %v849
    %v1034 = vunpack.c.l.s8.bf16 %v850
    %v1035 = vunpack.c.l.s8.bf16 %v851
    %v1036 = vunpack.c.l.s8.bf16 %v852
    %v1037 = vunpack.c.l.s8.bf16 %v853
    %v1038 = vunpack.c.l.s8.bf16 %v854
    %v1039 = vunpack.c.l.s8.bf16 %v855
    %v1040 = vunpack.c.h.s8.bf16 %v848
    %v1041 = vunpack.c.h.s8.bf16 %v849
    %v1042 = vunpack.c.h.s8.bf16 %v850
    %v1043 = vunpack.c.h.s8.bf16 %v851
    %v1044 = vunpack.c.h.s8.bf16 %v852
    %v1045 = vunpack.c.h.s8.bf16 %v853
    %v1046 = vunpack.c.h.s8.bf16 %v854
    %v1047 = vunpack.c.h.s8.bf16 %v855
    %v1048 = vunpack.c.l.s8.bf16 %v856
    %v1049 = vunpack.c.l.s8.bf16 %v857
    %v1050 = vunpack.c.l.s8.bf16 %v858
    %v1051 = vunpack.c.l.s8.bf16 %v859
    %v1052 = vunpack.c.l.s8.bf16 %v860
    %v1053 = vunpack.c.l.s8.bf16 %v861
    %v1054 = vunpack.c.l.s8.bf16 %v862
    %v1055 = vunpack.c.l.s8.bf16 %v863
    %v1056 = vunpack.c.h.s8.bf16 %v856
    %v1057 = vunpack.c.h.s8.bf16 %v857
    %v1058 = vunpack.c.h.s8.bf16 %v858
    %v1059 = vunpack.c.h.s8.bf16 %v859
    %v1060 = vunpack.c.h.s8.bf16 %v860
    %v1061 = vunpack.c.h.s8.bf16 %v861
    %v1062 = vunpack.c.h.s8.bf16 %v862
    %v1063 = vunpack.c.h.s8.bf16 %v863
    %v1064 = vunpack.c.l.s8.bf16 %v864
    %v1065 = vunpack.c.l.s8.bf16 %v865
    %v1066 = vunpack.c.l.s8.bf16 %v866
    %v1067 = vunpack.c.l.s8.bf16 %v867
    %v1068 = vunpack.c.l.s8.bf16 %v868
    %v1069 = vunpack.c.l.s8.bf16 %v869
    %v1070 = vunpack.c.l.s8.bf16 %v870
    %v1071 = vunpack.c.l.s8.bf16 %v871
    %v1072 = vunpack.c.h.s8.bf16 %v864
    %v1073 = vunpack.c.h.s8.bf16 %v865
    %v1074 = vunpack.c.h.s8.bf16 %v866
    %v1075 = vunpack.c.h.s8.bf16 %v867
    %v1076 = vunpack.c.h.s8.bf16 %v868
    %v1077 = vunpack.c.h.s8.bf16 %v869
    %v1078 = vunpack.c.h.s8.bf16 %v870
    %v1079 = vunpack.c.h.s8.bf16 %v871
    %v1080 = vunpack.c.l.s8.bf16 %v872
    %v1081 = vunpack.c.l.s8.bf16 %v873
    %v1082 = vunpack.c.l.s8.bf16 %v874
    %v1083 = vunpack.c.l.s8.bf16 %v875
    %v1084 = vunpack.c.l.s8.bf16 %v876
    %v1085 = vunpack.c.l.s8.bf16 %v877
    %v1086 = vunpack.c.l.s8.bf16 %v878
    %v1087 = vunpack.c.l.s8.bf16 %v879
    %v1088 = vunpack.c.h.s8.bf16 %v872
    %v1089 = vunpack.c.h.s8.bf16 %v873
    %v1090 = vunpack.c.h.s8.bf16 %v874
    %v1091 = vunpack.c.h.s8.bf16 %v875
    %v1092 = vunpack.c.h.s8.bf16 %v876
    %v1093 = vunpack.c.h.s8.bf16 %v877
    %v1094 = vunpack.c.h.s8.bf16 %v878
    %v1095 = vunpack.c.h.s8.bf16 %v879
    %v1096 = vunpack.c.l.s8.bf16 %v880
    %v1097 = vunpack.c.l.s8.bf16 %v881
    %v1098 = vunpack.c.l.s8.bf16 %v882
    %v1099 = vunpack.c.l.s8.bf16 %v883
    %v1100 = vunpack.c.l.s8.bf16 %v884
    %v1101 = vunpack.c.l.s8.bf16 %v885
    %v1102 = vunpack.c.l.s8.bf16 %v886
    %v1103 = vunpack.c.l.s8.bf16 %v887
    %v1104 = vunpack.c.h.s8.bf16 %v880
    %v1105 = vunpack.c.h.s8.bf16 %v881
    %v1106 = vunpack.c.h.s8.bf16 %v882
    %v1107 = vunpack.c.h.s8.bf16 %v883
    %v1108 = vunpack.c.h.s8.bf16 %v884
    %v1109 = vunpack.c.h.s8.bf16 %v885
    %v1110 = vunpack.c.h.s8.bf16 %v886
    %v1111 = vunpack.c.h.s8.bf16 %v887
    %v1112 = vunpack.c.l.s8.bf16 %v888
    %v1113 = vunpack.c.l.s8.bf16 %v889
    %v1114 = vunpack.c.l.s8.bf16 %v890
    %v1115 = vunpack.c.l.s8.bf16 %v891
    %v1116 = vunpack.c.l.s8.bf16 %v892
    %v1117 = vunpack.c.l.s8.bf16 %v893
    %v1118 = vunpack.c.l.s8.bf16 %v894
    %v1119 = vunpack.c.l.s8.bf16 %v895
    %v1120 = vunpack.c.h.s8.bf16 %v888
    %v1121 = vunpack.c.h.s8.bf16 %v889
    %v1122 = vunpack.c.h.s8.bf16 %v890
    %v1123 = vunpack.c.h.s8.bf16 %v891
    %v1124 = vunpack.c.h.s8.bf16 %v892
    %v1125 = vunpack.c.h.s8.bf16 %v893
    %v1126 = vunpack.c.h.s8.bf16 %v894
    %v1127 = vunpack.c.h.s8.bf16 %v895
    %v1128 = vunpack.c.l.s8.bf16 %v896
    %v1129 = vunpack.c.l.s8.bf16 %v897
    %v1130 = vunpack.c.l.s8.bf16 %v898
    %v1131 = vunpack.c.l.s8.bf16 %v899
    %v1132 = vunpack.c.l.s8.bf16 %v900
    %v1133 = vunpack.c.l.s8.bf16 %v901
    %v1134 = vunpack.c.l.s8.bf16 %v902
    %v1135 = vunpack.c.l.s8.bf16 %v903
    %v1136 = vunpack.c.h.s8.bf16 %v896
    %v1137 = vunpack.c.h.s8.bf16 %v897
    %v1138 = vunpack.c.h.s8.bf16 %v898
    %v1139 = vunpack.c.h.s8.bf16 %v899
    %v1140 = vunpack.c.h.s8.bf16 %v900
    %v1141 = vunpack.c.h.s8.bf16 %v901
    %v1142 = vunpack.c.h.s8.bf16 %v902
    %v1143 = vunpack.c.h.s8.bf16 %v903
    %v1144 = vunpack.c.l.s8.bf16 %v904
    %v1145 = vunpack.c.l.s8.bf16 %v905
    %v1146 = vunpack.c.l.s8.bf16 %v906
    %v1147 = vunpack.c.l.s8.bf16 %v907
    %v1148 = vunpack.c.l.s8.bf16 %v908
    %v1149 = vunpack.c.l.s8.bf16 %v909
    %v1150 = vunpack.c.l.s8.bf16 %v910
    %v1151 = vunpack.c.l.s8.bf16 %v911
    %v1152 = vunpack.c.h.s8.bf16 %v904
    %v1153 = vunpack.c.h.s8.bf16 %v905
    %v1154 = vunpack.c.h.s8.bf16 %v906
    %v1155 = vunpack.c.h.s8.bf16 %v907
    %v1156 = vunpack.c.h.s8.bf16 %v908
    %v1157 = vunpack.c.h.s8.bf16 %v909
    %v1158 = vunpack.c.h.s8.bf16 %v910
    %v1159 = vunpack.c.h.s8.bf16 %v911
    %v1160 = vunpack.c.l.s8.bf16 %v912
    %v1161 = vunpack.c.l.s8.bf16 %v913
    %v1162 = vunpack.c.l.s8.bf16 %v914
    %v1163 = vunpack.c.l.s8.bf16 %v915
    %v1164 = vunpack.c.l.s8.bf16 %v916
    %v1165 = vunpack.c.l.s8.bf16 %v917
    %v1166 = vunpack.c.l.s8.bf16 %v918
    %v1167 = vunpack.c.l.s8.bf16 %v919
    %v1168 = vunpack.c.h.s8.bf16 %v912
    %v1169 = vunpack.c.h.s8.bf16 %v913
    %v1170 = vunpack.c.h.s8.bf16 %v914
    %v1171 = vunpack.c.h.s8.bf16 %v915
    %v1172 = vunpack.c.h.s8.bf16 %v916
    %v1173 = vunpack.c.h.s8.bf16 %v917
    %v1174 = vunpack.c.h.s8.bf16 %v918
    %v1175 = vunpack.c.h.s8.bf16 %v919
    %1176 = vmatprep.subr.bf16.mxu0 %v977
    %1177 = vmatpush1.bf16.msra.mxu0 %v976
    %1178 = vmatprep.subr.bf16.mxu0 %v969
    %1179 = vmatpush1.bf16.msra.mxu0 %v968
    %1180 = vmatprep.subr.bf16.mxu0 %v961
    %1181 = vmatpush1.bf16.msra.mxu0 %v960
    %1182 = vmatprep.subr.bf16.mxu0 %v953
    %1183 = vmatpush1.bf16.msra.mxu0 %v952
    %1184 = vmatprep.subr.bf16.mxu0 %v945
    %1185 = vmatpush1.bf16.msra.mxu0 %v944
    %1186 = vmatprep.subr.bf16.mxu0 %v937
    %1187 = vmatpush1.bf16.msra.mxu0 %v936
    %1188 = vmatprep.subr.bf16.mxu0 %v929
    %1189 = vmatpush1.bf16.msra.mxu0 %v928
    %1190 = vmatprep.subr.bf16.mxu0 %v921
    %1191 = vmatpush1.bf16.msra.mxu0 %v920
    %1192 = vmatprep.subr.bf16.mxu0 %v1041
    %1193 = vmatpush2.bf16.msra.mxu0 %v1040
    %1194 = vmatprep.subr.bf16.mxu0 %v1033
    %1195 = vmatpush2.bf16.msra.mxu0 %v1032
    %1196 = vmatprep.subr.bf16.mxu0 %v1025
    %1197 = vmatpush2.bf16.msra.mxu0 %v1024
    %1198 = vmatprep.subr.bf16.mxu0 %v1017
    %1199 = vmatpush2.bf16.msra.mxu0 %v1016
    %1200 = vmatprep.subr.bf16.mxu0 %v1009
    %1201 = vmatpush2.bf16.msra.mxu0 %v1008
    %1202 = vmatprep.subr.bf16.mxu0 %v1001
    %1203 = vmatpush2.bf16.msra.mxu0 %v1000
    %1204 = vmatprep.subr.bf16.mxu0 %v993
    %1205 = vmatpush2.bf16.msra.mxu0 %v992
    %1206 = vmatprep.subr.bf16.mxu0 %v985
    %1207 = vmatpush2.bf16.msra.mxu0 %v984
    %1208 = vmatprep.mubr.bf16.mxu0 %v789
    %1209 = vmatmul.mubr.bf16.gmra.mxu0 %v788
    %v1210 = vpop.f32.mrf.mxu0
    %v1211 = vadd.f32 0.0, %v1210
    %v1212 = vpop.f32.mrf.mxu0
    %v1213 = vadd.f32 0.0, %v1212
    %v1214 = vpop.f32.mrf.mxu0
    %v1215 = vpop.f32.mrf.mxu0
    %1216 = vdwg.mxu0
    %1217 = vmatprep.subr.bf16.mxu0 %v1105
    %1218 = vmatpush1.bf16.msra.mxu0 %v1104
    %1219 = vmatprep.subr.bf16.mxu0 %v1097
    %1220 = vmatpush1.bf16.msra.mxu0 %v1096
    %1221 = vmatprep.subr.bf16.mxu0 %v1089
    %1222 = vmatpush1.bf16.msra.mxu0 %v1088
    %1223 = vmatprep.subr.bf16.mxu0 %v1081
    %1224 = vmatpush1.bf16.msra.mxu0 %v1080
    %1225 = vmatprep.subr.bf16.mxu0 %v1073
    %1226 = vmatpush1.bf16.msra.mxu0 %v1072
    %1227 = vmatprep.subr.bf16.mxu0 %v1065
    %1228 = vmatpush1.bf16.msra.mxu0 %v1064
    %1229 = vmatprep.subr.bf16.mxu0 %v1057
    %1230 = vmatpush1.bf16.msra.mxu0 %v1056
    %1231 = vmatprep.subr.bf16.mxu0 %v1049
    %1232 = vmatpush1.bf16.msra.mxu0 %v1048
    %1233 = vmatprep.subr.bf16.mxu0 %v1169
    %1234 = vmatpush2.bf16.msra.mxu0 %v1168
    %1235 = vmatprep.subr.bf16.mxu0 %v1161
    %1236 = vmatpush2.bf16.msra.mxu0 %v1160
    %1237 = vmatprep.subr.bf16.mxu0 %v1153
    %1238 = vmatpush2.bf16.msra.mxu0 %v1152
    %1239 = vmatprep.subr.bf16.mxu0 %v1145
    %1240 = vmatpush2.bf16.msra.mxu0 %v1144
    %1241 = vmatprep.subr.bf16.mxu0 %v1137
    %1242 = vmatpush2.bf16.msra.mxu0 %v1136
    %1243 = vmatprep.subr.bf16.mxu0 %v1129
    %1244 = vmatpush2.bf16.msra.mxu0 %v1128
    %1245 = vmatprep.subr.bf16.mxu0 %v1121
    %1246 = vmatpush2.bf16.msra.mxu0 %v1120
    %1247 = vmatprep.subr.bf16.mxu0 %v1113
    %1248 = vmatpush2.bf16.msra.mxu0 %v1112
    %1249 = vmatprep.mubr.bf16.mxu0 %v791
    %1250 = vmatmul.mubr.bf16.gmra.mxu0 %v790
    %v1251 = vpop.f32.mrf.mxu0
    %v1252 = vadd.f32 %v1211, %v1251
    %v1253 = vpop.f32.mrf.mxu0
    %v1254 = vadd.f32 %v1213, %v1253
    %v1255 = vpop.f32.mrf.mxu0
    %v1256 = vpop.f32.mrf.mxu0
    %1257 = vdwg.mxu0
    %1258 = vmatprep.subr.bf16.mxu0 %v979
    %1259 = vmatpush1.bf16.msra.mxu0 %v978
    %1260 = vmatprep.subr.bf16.mxu0 %v971
    %1261 = vmatpush1.bf16.msra.mxu0 %v970
    %1262 = vmatprep.subr.bf16.mxu0 %v963
    %1263 = vmatpush1.bf16.msra.mxu0 %v962
    %1264 = vmatprep.subr.bf16.mxu0 %v955
    %1265 = vmatpush1.bf16.msra.mxu0 %v954
    %1266 = vmatprep.subr.bf16.mxu0 %v947
    %1267 = vmatpush1.bf16.msra.mxu0 %v946
    %1268 = vmatprep.subr.bf16.mxu0 %v939
    %1269 = vmatpush1.bf16.msra.mxu0 %v938
    %1270 = vmatprep.subr.bf16.mxu0 %v931
    %1271 = vmatpush1.bf16.msra.mxu0 %v930
    %1272 = vmatprep.subr.bf16.mxu0 %v923
    %1273 = vmatpush1.bf16.msra.mxu0 %v922
    %1274 = vmatprep.subr.bf16.mxu0 %v1043
    %1275 = vmatpush2.bf16.msra.mxu0 %v1042
    %1276 = vmatprep.subr.bf16.mxu0 %v1035
    %1277 = vmatpush2.bf16.msra.mxu0 %v1034
    %1278 = vmatprep.subr.bf16.mxu0 %v1027
    %1279 = vmatpush2.bf16.msra.mxu0 %v1026
    %1280 = vmatprep.subr.bf16.mxu0 %v1019
    %1281 = vmatpush2.bf16.msra.mxu0 %v1018
    %1282 = vmatprep.subr.bf16.mxu0 %v1011
    %1283 = vmatpush2.bf16.msra.mxu0 %v1010
    %1284 = vmatprep.subr.bf16.mxu0 %v1003
    %1285 = vmatpush2.bf16.msra.mxu0 %v1002
    %1286 = vmatprep.subr.bf16.mxu0 %v995
    %1287 = vmatpush2.bf16.msra.mxu0 %v994
    %1288 = vmatprep.subr.bf16.mxu0 %v987
    %1289 = vmatpush2.bf16.msra.mxu0 %v986
    %1290 = vmatprep.mubr.bf16.mxu0 %v789
    %1291 = vmatmul.mubr.bf16.gmra.mxu0 %v788
    %v1292 = vpop.f32.mrf.mxu0
    %v1293 = vadd.f32 0.0, %v1292
    %v1294 = vpop.f32.mrf.mxu0
    %v1295 = vadd.f32 0.0, %v1294
    %v1296 = vpop.f32.mrf.mxu0
    %v1297 = vpop.f32.mrf.mxu0
    %1298 = vdwg.mxu0
    %1299 = vmatprep.subr.bf16.mxu0 %v1107
    %1300 = vmatpush1.bf16.msra.mxu0 %v1106
    %1301 = vmatprep.subr.bf16.mxu0 %v1099
    %1302 = vmatpush1.bf16.msra.mxu0 %v1098
    %1303 = vmatprep.subr.bf16.mxu0 %v1091
    %1304 = vmatpush1.bf16.msra.mxu0 %v1090
    %1305 = vmatprep.subr.bf16.mxu0 %v1083
    %1306 = vmatpush1.bf16.msra.mxu0 %v1082
    %1307 = vmatprep.subr.bf16.mxu0 %v1075
    %1308 = vmatpush1.bf16.msra.mxu0 %v1074
    %1309 = vmatprep.subr.bf16.mxu0 %v1067
    %1310 = vmatpush1.bf16.msra.mxu0 %v1066
    %1311 = vmatprep.subr.bf16.mxu0 %v1059
    %1312 = vmatpush1.bf16.msra.mxu0 %v1058
    %1313 = vmatprep.subr.bf16.mxu0 %v1051
    %1314 = vmatpush1.bf16.msra.mxu0 %v1050
    %1315 = vmatprep.subr.bf16.mxu0 %v1171
    %1316 = vmatpush2.bf16.msra.mxu0 %v1170
    %1317 = vmatprep.subr.bf16.mxu0 %v1163
    %1318 = vmatpush2.bf16.msra.mxu0 %v1162
    %1319 = vmatprep.subr.bf16.mxu0 %v1155
    %1320 = vmatpush2.bf16.msra.mxu0 %v1154
    %1321 = vmatprep.subr.bf16.mxu0 %v1147
    %1322 = vmatpush2.bf16.msra.mxu0 %v1146
    %1323 = vmatprep.subr.bf16.mxu0 %v1139
    %1324 = vmatpush2.bf16.msra.mxu0 %v1138
    %1325 = vmatprep.subr.bf16.mxu0 %v1131
    %1326 = vmatpush2.bf16.msra.mxu0 %v1130
    %1327 = vmatprep.subr.bf16.mxu0 %v1123
    %1328 = vmatpush2.bf16.msra.mxu0 %v1122
    %1329 = vmatprep.subr.bf16.mxu0 %v1115
    %1330 = vmatpush2.bf16.msra.mxu0 %v1114
    %1331 = vmatprep.mubr.bf16.mxu0 %v791
    %1332 = vmatmul.mubr.bf16.gmra.mxu0 %v790
    %v1333 = vpop.f32.mrf.mxu0
    %v1334 = vadd.f32 %v1293, %v1333
    %v1335 = vpop.f32.mrf.mxu0
    %v1336 = vadd.f32 %v1295, %v1335
    %v1337 = vpop.f32.mrf.mxu0
    %v1338 = vpop.f32.mrf.mxu0
    %1339 = vdwg.mxu0
    %1340 = vmatprep.subr.bf16.mxu0 %v981
    %1341 = vmatpush1.bf16.msra.mxu0 %v980
    %1342 = vmatprep.subr.bf16.mxu0 %v973
    %1343 = vmatpush1.bf16.msra.mxu0 %v972
    %1344 = vmatprep.subr.bf16.mxu0 %v965
    %1345 = vmatpush1.bf16.msra.mxu0 %v964
    %1346 = vmatprep.subr.bf16.mxu0 %v957
    %1347 = vmatpush1.bf16.msra.mxu0 %v956
    %1348 = vmatprep.subr.bf16.mxu0 %v949
    %1349 = vmatpush1.bf16.msra.mxu0 %v948
    %1350 = vmatprep.subr.bf16.mxu0 %v941
    %1351 = vmatpush1.bf16.msra.mxu0 %v940
    %1352 = vmatprep.subr.bf16.mxu0 %v933
    %1353 = vmatpush1.bf16.msra.mxu0 %v932
    %1354 = vmatprep.subr.bf16.mxu0 %v925
    %1355 = vmatpush1.bf16.msra.mxu0 %v924
    %1356 = vmatprep.subr.bf16.mxu0 %v1045
    %1357 = vmatpush2.bf16.msra.mxu0 %v1044
    %1358 = vmatprep.subr.bf16.mxu0 %v1037
    %1359 = vmatpush2.bf16.msra.mxu0 %v1036
    %1360 = vmatprep.subr.bf16.mxu0 %v1029
    %1361 = vmatpush2.bf16.msra.mxu0 %v1028
    %1362 = vmatprep.subr.bf16.mxu0 %v1021
    %1363 = vmatpush2.bf16.msra.mxu0 %v1020
    %1364 = vmatprep.subr.bf16.mxu0 %v1013
    %1365 = vmatpush2.bf16.msra.mxu0 %v1012
    %1366 = vmatprep.subr.bf16.mxu0 %v1005
    %1367 = vmatpush2.bf16.msra.mxu0 %v1004
    %1368 = vmatprep.subr.bf16.mxu0 %v997
    %1369 = vmatpush2.bf16.msra.mxu0 %v996
    %1370 = vmatprep.subr.bf16.mxu0 %v989
    %1371 = vmatpush2.bf16.msra.mxu0 %v988
    %1372 = vmatprep.mubr.bf16.mxu0 %v789
    %1373 = vmatmul.mubr.bf16.gmra.mxu0 %v788
    %v1374 = vpop.f32.mrf.mxu0
    %v1375 = vadd.f32 0.0, %v1374
    %v1376 = vpop.f32.mrf.mxu0
    %v1377 = vadd.f32 0.0, %v1376
    %v1378 = vpop.f32.mrf.mxu0
    %v1379 = vpop.f32.mrf.mxu0
    %1380 = vdwg.mxu0
    %1381 = vmatprep.subr.bf16.mxu0 %v1109
    %1382 = vmatpush1.bf16.msra.mxu0 %v1108
    %1383 = vmatprep.subr.bf16.mxu0 %v1101
    %1384 = vmatpush1.bf16.msra.mxu0 %v1100
    %1385 = vmatprep.subr.bf16.mxu0 %v1093
    %1386 = vmatpush1.bf16.msra.mxu0 %v1092
    %1387 = vmatprep.subr.bf16.mxu0 %v1085
    %1388 = vmatpush1.bf16.msra.mxu0 %v1084
    %1389 = vmatprep.subr.bf16.mxu0 %v1077
    %1390 = vmatpush1.bf16.msra.mxu0 %v1076
    %1391 = vmatprep.subr.bf16.mxu0 %v1069
    %1392 = vmatpush1.bf16.msra.mxu0 %v1068
    %1393 = vmatprep.subr.bf16.mxu0 %v1061
    %1394 = vmatpush1.bf16.msra.mxu0 %v1060
    %1395 = vmatprep.subr.bf16.mxu0 %v1053
    %1396 = vmatpush1.bf16.msra.mxu0 %v1052
    %1397 = vmatprep.subr.bf16.mxu0 %v1173
    %1398 = vmatpush2.bf16.msra.mxu0 %v1172
    %1399 = vmatprep.subr.bf16.mxu0 %v1165
    %1400 = vmatpush2.bf16.msra.mxu0 %v1164
    %1401 = vmatprep.subr.bf16.mxu0 %v1157
    %1402 = vmatpush2.bf16.msra.mxu0 %v1156
    %1403 = vmatprep.subr.bf16.mxu0 %v1149
    %1404 = vmatpush2.bf16.msra.mxu0 %v1148
    %1405 = vmatprep.subr.bf16.mxu0 %v1141
    %1406 = vmatpush2.bf16.msra.mxu0 %v1140
    %1407 = vmatprep.subr.bf16.mxu0 %v1133
    %1408 = vmatpush2.bf16.msra.mxu0 %v1132
    %1409 = vmatprep.subr.bf16.mxu0 %v1125
    %1410 = vmatpush2.bf16.msra.mxu0 %v1124
    %1411 = vmatprep.subr.bf16.mxu0 %v1117
    %1412 = vmatpush2.bf16.msra.mxu0 %v1116
    %1413 = vmatprep.mubr.bf16.mxu0 %v791
    %1414 = vmatmul.mubr.bf16.gmra.mxu0 %v790
    %v1415 = vpop.f32.mrf.mxu0
    %v1416 = vadd.f32 %v1375, %v1415
    %v1417 = vpop.f32.mrf.mxu0
    %v1418 = vadd.f32 %v1377, %v1417
    %v1419 = vpop.f32.mrf.mxu0
    %v1420 = vpop.f32.mrf.mxu0
    %1421 = vdwg.mxu0
    %1422 = vmatprep.subr.bf16.mxu0 %v983
    %1423 = vmatpush1.bf16.msra.mxu0 %v982
    %1424 = vmatprep.subr.bf16.mxu0 %v975
    %1425 = vmatpush1.bf16.msra.mxu0 %v974
    %1426 = vmatprep.subr.bf16.mxu0 %v967
    %1427 = vmatpush1.bf16.msra.mxu0 %v966
    %1428 = vmatprep.subr.bf16.mxu0 %v959
    %1429 = vmatpush1.bf16.msra.mxu0 %v958
    %1430 = vmatprep.subr.bf16.mxu0 %v951
    %1431 = vmatpush1.bf16.msra.mxu0 %v950
    %1432 = vmatprep.subr.bf16.mxu0 %v943
    %1433 = vmatpush1.bf16.msra.mxu0 %v942
    %1434 = vmatprep.subr.bf16.mxu0 %v935
    %1435 = vmatpush1.bf16.msra.mxu0 %v934
    %1436 = vmatprep.subr.bf16.mxu0 %v927
    %1437 = vmatpush1.bf16.msra.mxu0 %v926
    %1438 = vmatprep.subr.bf16.mxu0 %v1047
    %1439 = vmatpush2.bf16.msra.mxu0 %v1046
    %1440 = vmatprep.subr.bf16.mxu0 %v1039
    %1441 = vmatpush2.bf16.msra.mxu0 %v1038
    %1442 = vmatprep.subr.bf16.mxu0 %v1031
    %1443 = vmatpush2.bf16.msra.mxu0 %v1030
    %1444 = vmatprep.subr.bf16.mxu0 %v1023
    %1445 = vmatpush2.bf16.msra.mxu0 %v1022
    %1446 = vmatprep.subr.bf16.mxu0 %v1015
    %1447 = vmatpush2.bf16.msra.mxu0 %v1014
    %1448 = vmatprep.subr.bf16.mxu0 %v1007
    %1449 = vmatpush2.bf16.msra.mxu0 %v1006
    %1450 = vmatprep.subr.bf16.mxu0 %v999
    %1451 = vmatpush2.bf16.msra.mxu0 %v998
    %1452 = vmatprep.subr.bf16.mxu0 %v991
    %1453 = vmatpush2.bf16.msra.mxu0 %v990
    %1454 = vmatprep.mubr.bf16.mxu0 %v789
    %1455 = vmatmul.mubr.bf16.gmra.mxu0 %v788
    %v1456 = vpop.f32.mrf.mxu0
    %v1457 = vadd.f32 0.0, %v1456
    %v1458 = vpop.f32.mrf.mxu0
    %v1459 = vadd.f32 0.0, %v1458
    %v1460 = vpop.f32.mrf.mxu0
    %v1461 = vpop.f32.mrf.mxu0
    %1462 = vdwg.mxu0
    %1463 = vmatprep.subr.bf16.mxu0 %v1111
    %1464 = vmatpush1.bf16.msra.mxu0 %v1110
    %1465 = vmatprep.subr.bf16.mxu0 %v1103
    %1466 = vmatpush1.bf16.msra.mxu0 %v1102
    %1467 = vmatprep.subr.bf16.mxu0 %v1095
    %1468 = vmatpush1.bf16.msra.mxu0 %v1094
    %1469 = vmatprep.subr.bf16.mxu0 %v1087
    %1470 = vmatpush1.bf16.msra.mxu0 %v1086
    %1471 = vmatprep.subr.bf16.mxu0 %v1079
    %1472 = vmatpush1.bf16.msra.mxu0 %v1078
    %1473 = vmatprep.subr.bf16.mxu0 %v1071
    %1474 = vmatpush1.bf16.msra.mxu0 %v1070
    %1475 = vmatprep.subr.bf16.mxu0 %v1063
    %1476 = vmatpush1.bf16.msra.mxu0 %v1062
    %1477 = vmatprep.subr.bf16.mxu0 %v1055
    %1478 = vmatpush1.bf16.msra.mxu0 %v1054
    %1479 = vmatprep.subr.bf16.mxu0 %v1175
    %1480 = vmatpush2.bf16.msra.mxu0 %v1174
    %1481 = vmatprep.subr.bf16.mxu0 %v1167
    %1482 = vmatpush2.bf16.msra.mxu0 %v1166
    %1483 = vmatprep.subr.bf16.mxu0 %v1159
    %1484 = vmatpush2.bf16.msra.mxu0 %v1158
    %1485 = vmatprep.subr.bf16.mxu0 %v1151
    %1486 = vmatpush2.bf16.msra.mxu0 %v1150
    %1487 = vmatprep.subr.bf16.mxu0 %v1143
    %1488 = vmatpush2.bf16.msra.mxu0 %v1142
    %1489 = vmatprep.subr.bf16.mxu0 %v1135
    %1490 = vmatpush2.bf16.msra.mxu0 %v1134
    %1491 = vmatprep.subr.bf16.mxu0 %v1127
    %1492 = vmatpush2.bf16.msra.mxu0 %v1126
    %1493 = vmatprep.subr.bf16.mxu0 %v1119
    %1494 = vmatpush2.bf16.msra.mxu0 %v1118
    %1495 = vmatprep.mubr.bf16.mxu0 %v791
    %1496 = vmatmul.mubr.bf16.gmra.mxu0 %v790
    %v1497 = vpop.f32.mrf.mxu0
    %v1498 = vadd.f32 %v1457, %v1497
    %v1499 = vpop.f32.mrf.mxu0
    %v1500 = vadd.f32 %v1459, %v1499
    %v1501 = vpop.f32.mrf.mxu0
    %v1502 = vpop.f32.mrf.mxu0
    %1503 = vdwg.mxu0
    %v1504 = vld [vmem:[#allocation12 + $0x23] sm:$0xff]
    %v1506 = vlaneseq
    %v1507 = vshrl.u32 %v1506, 7
    %v1508 = vsub.s32 0, %v1507
    %v1509 = vrot.slane %v1504, %v1508
    %v1510 = vlaneseq
    %v1511 = vshrl.u32 %v1510, 7
    %v1512 = vsub.s32 1, %v1511
    %v1513 = vrot.slane %v1504, %v1512
    %v1514 = vlaneseq
    %v1515 = vshrl.u32 %v1514, 7
    %v1516 = vsub.s32 2, %v1515
    %v1517 = vrot.slane %v1504, %v1516
    %v1518 = vlaneseq
    %v1519 = vshrl.u32 %v1518, 7
    %v1520 = vsub.s32 3, %v1519
    %v1521 = vrot.slane %v1504, %v1520
    %v1522 = vlaneseq
    %v1523 = vshrl.u32 %v1522, 7
    %v1524 = vsub.s32 4, %v1523
    %v1525 = vrot.slane %v1504, %v1524
    %v1526 = vlaneseq
    %v1527 = vshrl.u32 %v1526, 7
    %v1528 = vsub.s32 5, %v1527
    %v1529 = vrot.slane %v1504, %v1528
    %v1530 = vlaneseq
    %v1531 = vshrl.u32 %v1530, 7
    %v1532 = vsub.s32 6, %v1531
    %v1533 = vrot.slane %v1504, %v1532
    %v1534 = vlaneseq
    %v1535 = vshrl.u32 %v1534, 7
    %v1536 = vsub.s32 7, %v1535
    %v1537 = vrot.slane %v1504, %v1536
    %v1546 = vmul.f32 %v1252, %v1509
    %v1547 = vmul.f32 %v1254, %v1513
    %v1548 = vmul.f32 %v1334, %v1517
    %v1549 = vmul.f32 %v1336, %v1521
    %v1550 = vmul.f32 %v1416, %v1525
    %v1551 = vmul.f32 %v1418, %v1529
    %v1552 = vmul.f32 %v1498, %v1533
    %v1553 = vmul.f32 %v1500, %v1537
    %v1554 = vld [vmem:[#allocation12 + $0xd] sm:$0xff]
    %v1555 = vld [vmem:[#allocation12 + $0x15] sm:$0xff]
    %v1556 = vrot.slane %v1546, 4
    %v1557 = vadd.f32 %v1546, %v1556
    %v1558 = vrot.slane %v1557, 2
    %v1559 = vadd.f32 %v1557, %v1558
    %v1560 = vrot.slane %v1559, 1
    %v1561 = vadd.f32 %v1559, %v1560
    %v1562 = vrot.slane %v1547, 4
    %v1563 = vadd.f32 %v1547, %v1562
    %v1564 = vrot.slane %v1563, 2
    %v1565 = vadd.f32 %v1563, %v1564
    %v1566 = vrot.slane %v1565, 1
    %v1567 = vadd.f32 %v1565, %v1566
    %v1568 = vrot.slane %v1548, 4
    %v1569 = vadd.f32 %v1548, %v1568
    %v1570 = vrot.slane %v1569, 2
    %v1571 = vadd.f32 %v1569, %v1570
    %v1572 = vrot.slane %v1571, 1
    %v1573 = vadd.f32 %v1571, %v1572
    %v1574 = vrot.slane %v1549, 4
    %v1575 = vadd.f32 %v1549, %v1574
    %v1576 = vrot.slane %v1575, 2
    %v1577 = vadd.f32 %v1575, %v1576
    %v1578 = vrot.slane %v1577, 1
    %v1579 = vadd.f32 %v1577, %v1578
    %v1580 = vrot.slane %v1550, 4
    %v1581 = vadd.f32 %v1550, %v1580
    %v1582 = vrot.slane %v1581, 2
    %v1583 = vadd.f32 %v1581, %v1582
    %v1584 = vrot.slane %v1583, 1
    %v1585 = vadd.f32 %v1583, %v1584
    %v1586 = vrot.slane %v1551, 4
    %v1587 = vadd.f32 %v1551, %v1586
    %v1588 = vrot.slane %v1587, 2
    %v1589 = vadd.f32 %v1587, %v1588
    %v1590 = vrot.slane %v1589, 1
    %v1591 = vadd.f32 %v1589, %v1590
    %v1592 = vrot.slane %v1552, 4
    %v1593 = vadd.f32 %v1552, %v1592
    %v1594 = vrot.slane %v1593, 2
    %v1595 = vadd.f32 %v1593, %v1594
    %v1596 = vrot.slane %v1595, 1
    %v1597 = vadd.f32 %v1595, %v1596
    %v1598 = vrot.slane %v1553, 4
    %v1599 = vadd.f32 %v1553, %v1598
    %v1600 = vrot.slane %v1599, 2
    %v1601 = vadd.f32 %v1599, %v1600
    %v1602 = vrot.slane %v1601, 1
    %v1603 = vadd.f32 %v1601, %v1602
    %v1604 = vmul.f32 %v1561, %v332
    %v1605 = vmul.f32 %v1567, %v332
    %v1606 = vmul.f32 %v1573, %v332
    %v1607 = vmul.f32 %v1579, %v332
    %v1608 = vmul.f32 %v1585, %v332
    %v1609 = vmul.f32 %v1591, %v332
    %v1610 = vmul.f32 %v1597, %v332
    %v1611 = vmul.f32 %v1603, %v332
    %v1612 = vsub.f32 %v1546, %v1604
    %v1613 = vsub.f32 %v1547, %v1605
    %v1614 = vsub.f32 %v1548, %v1606
    %v1615 = vsub.f32 %v1549, %v1607
    %v1616 = vsub.f32 %v1550, %v1608
    %v1617 = vsub.f32 %v1551, %v1609
    %v1618 = vsub.f32 %v1552, %v1610
    %v1619 = vsub.f32 %v1553, %v1611
    %v1620 = vmul.f32 %v1612, %v1612
    %v1621 = vmul.f32 %v1613, %v1613
    %v1622 = vmul.f32 %v1614, %v1614
    %v1623 = vmul.f32 %v1615, %v1615
    %v1624 = vmul.f32 %v1616, %v1616
    %v1625 = vmul.f32 %v1617, %v1617
    %v1626 = vmul.f32 %v1618, %v1618
    %v1627 = vmul.f32 %v1619, %v1619
    %v1628 = vrot.slane %v1620, 4
    %v1629 = vadd.f32 %v1620, %v1628
    %v1630 = vrot.slane %v1629, 2
    %v1631 = vadd.f32 %v1629, %v1630
    %v1632 = vrot.slane %v1631, 1
    %v1633 = vadd.f32 %v1631, %v1632
    %v1634 = vrot.slane %v1621, 4
    %v1635 = vadd.f32 %v1621, %v1634
    %v1636 = vrot.slane %v1635, 2
    %v1637 = vadd.f32 %v1635, %v1636
    %v1638 = vrot.slane %v1637, 1
    %v1639 = vadd.f32 %v1637, %v1638
    %v1640 = vrot.slane %v1622, 4
    %v1641 = vadd.f32 %v1622, %v1640
    %v1642 = vrot.slane %v1641, 2
    %v1643 = vadd.f32 %v1641, %v1642
    %v1644 = vrot.slane %v1643, 1
    %v1645 = vadd.f32 %v1643, %v1644
    %v1646 = vrot.slane %v1623, 4
    %v1647 = vadd.f32 %v1623, %v1646
    %v1648 = vrot.slane %v1647, 2
    %v1649 = vadd.f32 %v1647, %v1648
    %v1650 = vrot.slane %v1649, 1
    %v1651 = vadd.f32 %v1649, %v1650
    %v1652 = vrot.slane %v1624, 4
    %v1653 = vadd.f32 %v1624, %v1652
    %v1654 = vrot.slane %v1653, 2
    %v1655 = vadd.f32 %v1653, %v1654
    %v1656 = vrot.slane %v1655, 1
    %v1657 = vadd.f32 %v1655, %v1656
    %v1658 = vrot.slane %v1625, 4
    %v1659 = vadd.f32 %v1625, %v1658
    %v1660 = vrot.slane %v1659, 2
    %v1661 = vadd.f32 %v1659, %v1660
    %v1662 = vrot.slane %v1661, 1
    %v1663 = vadd.f32 %v1661, %v1662
    %v1664 = vrot.slane %v1626, 4
    %v1665 = vadd.f32 %v1626, %v1664
    %v1666 = vrot.slane %v1665, 2
    %v1667 = vadd.f32 %v1665, %v1666
    %v1668 = vrot.slane %v1667, 1
    %v1669 = vadd.f32 %v1667, %v1668
    %v1670 = vrot.slane %v1627, 4
    %v1671 = vadd.f32 %v1627, %v1670
    %v1672 = vrot.slane %v1671, 2
    %v1673 = vadd.f32 %v1671, %v1672
    %v1674 = vrot.slane %v1673, 1
    %v1675 = vadd.f32 %v1673, %v1674
    %v1676 = vmul.f32 %v1633, %v332
    %v1677 = vmul.f32 %v1639, %v332
    %v1678 = vmul.f32 %v1645, %v332
    %v1679 = vmul.f32 %v1651, %v332
    %v1680 = vmul.f32 %v1657, %v332
    %v1681 = vmul.f32 %v1663, %v332
    %v1682 = vmul.f32 %v1669, %v332
    %v1683 = vmul.f32 %v1675, %v332
    %v1684 = vadd.f32 %v1676, 0.8
    %v1685 = vadd.f32 %v1677, 0.8
    %v1686 = vadd.f32 %v1678, 0.8
    %v1687 = vadd.f32 %v1679, 0.8
    %v1688 = vadd.f32 %v1680, 0.8
    %v1689 = vadd.f32 %v1681, 0.8
    %v1690 = vadd.f32 %v1682, 0.8
    %v1691 = vadd.f32 %v1683, 0.8
    %v1692 = vrsqrt.pop %v1684
    %v1693 = vrsqrt.pop %v1685
    %v1694 = vrsqrt.pop %v1686
    %v1695 = vrsqrt.pop %v1687
    %v1696 = vrsqrt.pop %v1688
    %v1697 = vrsqrt.pop %v1689
    %v1698 = vrsqrt.pop %v1690
    %v1699 = vrsqrt.pop %v1691
    %v1708 = vcombine.low %v1692, %v1693
    %v1709 = vcombine.low %v1694, %v1695
    %v1710 = vcombine.low %v1696, %v1697
    %v1711 = vcombine.low %v1698, %v1699
    %v1713 = vunpack.c.l.s4 1966171168
    %v1714 = vunpack.c.0.s8 %v1713
    %v1715 = vlaneseq
    %v1716 = vshrl.u32 %v1715, 7
    %v1717 = vsub.s32 %v1714, %v1716
    %v1718 = vrot.slane %v1708, %v1717
    %v1720 = vunpack.c.l.s4 1966171168
    %v1721 = vunpack.c.0.s8 %v1720
    %v1722 = vlaneseq
    %v1723 = vshrl.u32 %v1722, 7
    %v1724 = vsub.s32 %v1721, %v1723
    %v1725 = vrot.slane %v1709, %v1724
    %v1727 = vunpack.c.l.s4 1966171168
    %v1728 = vunpack.c.0.s8 %v1727
    %v1729 = vlaneseq
    %v1730 = vshrl.u32 %v1729, 7
    %v1731 = vsub.s32 %v1728, %v1730
    %v1732 = vrot.slane %v1710, %v1731
    %v1734 = vunpack.c.l.s4 1966171168
    %v1735 = vunpack.c.0.s8 %v1734
    %v1736 = vlaneseq
    %v1737 = vshrl.u32 %v1736, 7
    %v1738 = vsub.s32 %v1735, %v1737
    %v1739 = vrot.slane %v1711, %v1738
    %v1740 = vcombine.low %v1718, %v1725
    %v1741 = vcombine.low %v1732, %v1739
    %v1743 = vunpack.c.l.s4 1966171168
    %v1744 = vunpack.c.0.s8 %v1743
    %v1745 = vlaneseq
    %v1746 = vshrl.u32 %v1745, 7
    %v1747 = vsub.s32 %v1744, %v1746
    %v1748 = vrot.slane %v1740, %v1747
    %v1750 = vunpack.c.l.s4 1966171168
    %v1751 = vunpack.c.0.s8 %v1750
    %v1752 = vlaneseq
    %v1753 = vshrl.u32 %v1752, 7
    %v1754 = vsub.s32 %v1751, %v1753
    %v1755 = vrot.slane %v1741, %v1754
    %v1756 = vcombine.low %v1748, %v1755
    %v1758 = vmul.f32 %v1554, %v1756
    %v1760 = vlaneseq
    %v1761 = vshrl.u32 %v1760, 7
    %v1762 = vsub.s32 0, %v1761
    %v1763 = vrot.slane %v1758, %v1762
    %v1764 = vlaneseq
    %v1765 = vshrl.u32 %v1764, 7
    %v1766 = vsub.s32 1, %v1765
    %v1767 = vrot.slane %v1758, %v1766
    %v1768 = vlaneseq
    %v1769 = vshrl.u32 %v1768, 7
    %v1770 = vsub.s32 2, %v1769
    %v1771 = vrot.slane %v1758, %v1770
    %v1772 = vlaneseq
    %v1773 = vshrl.u32 %v1772, 7
    %v1774 = vsub.s32 3, %v1773
    %v1775 = vrot.slane %v1758, %v1774
    %v1776 = vlaneseq
    %v1777 = vshrl.u32 %v1776, 7
    %v1778 = vsub.s32 4, %v1777
    %v1779 = vrot.slane %v1758, %v1778
    %v1780 = vlaneseq
    %v1781 = vshrl.u32 %v1780, 7
    %v1782 = vsub.s32 5, %v1781
    %v1783 = vrot.slane %v1758, %v1782
    %v1784 = vlaneseq
    %v1785 = vshrl.u32 %v1784, 7
    %v1786 = vsub.s32 6, %v1785
    %v1787 = vrot.slane %v1758, %v1786
    %v1788 = vlaneseq
    %v1789 = vshrl.u32 %v1788, 7
    %v1790 = vsub.s32 7, %v1789
    %v1791 = vrot.slane %v1758, %v1790
    %v1800 = vmul.f32 %v1612, %v1763
    %v1801 = vmul.f32 %v1613, %v1767
    %v1802 = vmul.f32 %v1614, %v1771
    %v1803 = vmul.f32 %v1615, %v1775
    %v1804 = vmul.f32 %v1616, %v1779
    %v1805 = vmul.f32 %v1617, %v1783
    %v1806 = vmul.f32 %v1618, %v1787
    %v1807 = vmul.f32 %v1619, %v1791
    %v1809 = vlaneseq
    %v1810 = vshrl.u32 %v1809, 7
    %v1811 = vsub.s32 0, %v1810
    %v1812 = vrot.slane %v1555, %v1811
    %v1813 = vlaneseq
    %v1814 = vshrl.u32 %v1813, 7
    %v1815 = vsub.s32 1, %v1814
    %v1816 = vrot.slane %v1555, %v1815
    %v1817 = vlaneseq
    %v1818 = vshrl.u32 %v1817, 7
    %v1819 = vsub.s32 2, %v1818
    %v1820 = vrot.slane %v1555, %v1819
    %v1821 = vlaneseq
    %v1822 = vshrl.u32 %v1821, 7
    %v1823 = vsub.s32 3, %v1822
    %v1824 = vrot.slane %v1555, %v1823
    %v1825 = vlaneseq
    %v1826 = vshrl.u32 %v1825, 7
    %v1827 = vsub.s32 4, %v1826
    %v1828 = vrot.slane %v1555, %v1827
    %v1829 = vlaneseq
    %v1830 = vshrl.u32 %v1829, 7
    %v1831 = vsub.s32 5, %v1830
    %v1832 = vrot.slane %v1555, %v1831
    %v1833 = vlaneseq
    %v1834 = vshrl.u32 %v1833, 7
    %v1835 = vsub.s32 6, %v1834
    %v1836 = vrot.slane %v1555, %v1835
    %v1837 = vlaneseq
    %v1838 = vshrl.u32 %v1837, 7
    %v1839 = vsub.s32 7, %v1838
    %v1840 = vrot.slane %v1555, %v1839
    %v1849 = vadd.f32 %v1800, %v1812
    %v1850 = vadd.f32 %v1801, %v1816
    %v1851 = vadd.f32 %v1802, %v1820
    %v1852 = vadd.f32 %v1803, %v1824
    %v1853 = vadd.f32 %v1804, %v1828
    %v1854 = vadd.f32 %v1805, %v1832
    %v1855 = vadd.f32 %v1806, %v1836
    %v1856 = vadd.f32 %v1807, %v1840
    %vm1857 = vcmp.gt.f32.partialorder %v1849, 0.0
    %vm1858 = vcmp.gt.f32.partialorder %v1850, 0.0
    %vm1859 = vcmp.gt.f32.partialorder %v1851, 0.0
    %vm1860 = vcmp.gt.f32.partialorder %v1852, 0.0
    %vm1861 = vcmp.gt.f32.partialorder %v1853, 0.0
    %vm1862 = vcmp.gt.f32.partialorder %v1854, 0.0
    %vm1863 = vcmp.gt.f32.partialorder %v1855, 0.0
    %vm1864 = vcmp.gt.f32.partialorder %v1856, 0.0
    %v1865 = vmul.f32 %v1849, 0.2
    %v1866 = vmul.f32 %v1850, 0.2
    %v1867 = vmul.f32 %v1851, 0.2
    %v1868 = vmul.f32 %v1852, 0.2
    %v1869 = vmul.f32 %v1853, 0.2
    %v1870 = vmul.f32 %v1854, 0.2
    %v1871 = vmul.f32 %v1855, 0.2
    %v1872 = vmul.f32 %v1856, 0.2
    %v1873 = vsel %vm1857, %v1849, %v1865
    %v1874 = vsel %vm1858, %v1850, %v1866
    %v1875 = vsel %vm1859, %v1851, %v1867
    %v1876 = vsel %vm1860, %v1852, %v1868
    %v1877 = vsel %vm1861, %v1853, %v1869
    %v1878 = vsel %vm1862, %v1854, %v1870
    %v1879 = vsel %vm1863, %v1855, %v1871
    %v1880 = vsel %vm1864, %v1856, %v1872
    %s1881 = smul.u32 2, 128
    %s1882 = smul.u32 %s1881, 2
    %s1883 = sshll.u32 %s1882, 4
    %1884 = dma.done %s96, %s1883
    %v1885 = vpack.c.bf16 %v1873, %v1873
    %v1886 = vpack.c.bf16 %v1874, %v1874
    %v1887 = vpack.c.bf16 %v1875, %v1875
    %v1888 = vpack.c.bf16 %v1876, %v1876
    %v1889 = vpack.c.bf16 %v1877, %v1877
    %v1890 = vpack.c.bf16 %v1878, %v1878
    %v1891 = vpack.c.bf16 %v1879, %v1879
    %v1892 = vpack.c.bf16 %v1880, %v1880
    %v1893 = vld [vmem:[#allocation4] sm:$0xff]
    %v1894 = vld [vmem:[#allocation4 + $0x8] sm:$0xff]
    %v1895 = vld [vmem:[#allocation4 + $0x10] sm:$0xff]
    %v1896 = vld [vmem:[#allocation4 + $0x18] sm:$0xff]
    %v1897 = vld [vmem:[#allocation4 + $0x20] sm:$0xff]
    %v1898 = vld [vmem:[#allocation4 + $0x28] sm:$0xff]
    %v1899 = vld [vmem:[#allocation4 + $0x30] sm:$0xff]
    %v1900 = vld [vmem:[#allocation4 + $0x38] sm:$0xff]
    %v1901 = vld [vmem:[#allocation4 + $0x40] sm:$0xff]
    %v1902 = vld [vmem:[#allocation4 + $0x48] sm:$0xff]
    %v1903 = vld [vmem:[#allocation4 + $0x50] sm:$0xff]
    %v1904 = vld [vmem:[#allocation4 + $0x58] sm:$0xff]
    %v1905 = vld [vmem:[#allocation4 + $0x60] sm:$0xff]
    %v1906 = vld [vmem:[#allocation4 + $0x68] sm:$0xff]
    %v1907 = vld [vmem:[#allocation4 + $0x70] sm:$0xff]
    %v1908 = vld [vmem:[#allocation4 + $0x78] sm:$0xff]
    %v1909 = vld [vmem:[#allocation4 + $0x80] sm:$0xff]
    %v1910 = vld [vmem:[#allocation4 + $0x88] sm:$0xff]
    %v1911 = vld [vmem:[#allocation4 + $0x90] sm:$0xff]
    %v1912 = vld [vmem:[#allocation4 + $0x98] sm:$0xff]
    %v1913 = vld [vmem:[#allocation4 + $0xa0] sm:$0xff]
    %v1914 = vld [vmem:[#allocation4 + $0xa8] sm:$0xff]
    %v1915 = vld [vmem:[#allocation4 + $0xb0] sm:$0xff]
    %v1916 = vld [vmem:[#allocation4 + $0xb8] sm:$0xff]
    %v1917 = vld [vmem:[#allocation4 + $0xc0] sm:$0xff]
    %v1918 = vld [vmem:[#allocation4 + $0xc8] sm:$0xff]
    %v1919 = vld [vmem:[#allocation4 + $0xd0] sm:$0xff]
    %v1920 = vld [vmem:[#allocation4 + $0xd8] sm:$0xff]
    %v1921 = vld [vmem:[#allocation4 + $0xe0] sm:$0xff]
    %v1922 = vld [vmem:[#allocation4 + $0xe8] sm:$0xff]
    %v1923 = vld [vmem:[#allocation4 + $0xf0] sm:$0xff]
    %v1924 = vld [vmem:[#allocation4 + $0xf8] sm:$0xff]
    %v1925 = vld [vmem:[#allocation4 + $0x100] sm:$0xff]
    %v1926 = vld [vmem:[#allocation4 + $0x108] sm:$0xff]
    %v1927 = vld [vmem:[#allocation4 + $0x110] sm:$0xff]
    %v1928 = vld [vmem:[#allocation4 + $0x118] sm:$0xff]
    %v1929 = vld [vmem:[#allocation4 + $0x120] sm:$0xff]
    %v1930 = vld [vmem:[#allocation4 + $0x128] sm:$0xff]
    %v1931 = vld [vmem:[#allocation4 + $0x130] sm:$0xff]
    %v1932 = vld [vmem:[#allocation4 + $0x138] sm:$0xff]
    %v1933 = vld [vmem:[#allocation4 + $0x140] sm:$0xff]
    %v1934 = vld [vmem:[#allocation4 + $0x148] sm:$0xff]
    %v1935 = vld [vmem:[#allocation4 + $0x150] sm:$0xff]
    %v1936 = vld [vmem:[#allocation4 + $0x158] sm:$0xff]
    %v1937 = vld [vmem:[#allocation4 + $0x160] sm:$0xff]
    %v1938 = vld [vmem:[#allocation4 + $0x168] sm:$0xff]
    %v1939 = vld [vmem:[#allocation4 + $0x170] sm:$0xff]
    %v1940 = vld [vmem:[#allocation4 + $0x178] sm:$0xff]
    %v1941 = vld [vmem:[#allocation4 + $0x180] sm:$0xff]
    %v1942 = vld [vmem:[#allocation4 + $0x188] sm:$0xff]
    %v1943 = vld [vmem:[#allocation4 + $0x190] sm:$0xff]
    %v1944 = vld [vmem:[#allocation4 + $0x198] sm:$0xff]
    %v1945 = vld [vmem:[#allocation4 + $0x1a0] sm:$0xff]
    %v1946 = vld [vmem:[#allocation4 + $0x1a8] sm:$0xff]
    %v1947 = vld [vmem:[#allocation4 + $0x1b0] sm:$0xff]
    %v1948 = vld [vmem:[#allocation4 + $0x1b8] sm:$0xff]
    %v1949 = vld [vmem:[#allocation4 + $0x1c0] sm:$0xff]
    %v1950 = vld [vmem:[#allocation4 + $0x1c8] sm:$0xff]
    %v1951 = vld [vmem:[#allocation4 + $0x1d0] sm:$0xff]
    %v1952 = vld [vmem:[#allocation4 + $0x1d8] sm:$0xff]
    %v1953 = vld [vmem:[#allocation4 + $0x1e0] sm:$0xff]
    %v1954 = vld [vmem:[#allocation4 + $0x1e8] sm:$0xff]
    %v1955 = vld [vmem:[#allocation4 + $0x1f0] sm:$0xff]
    %v1956 = vld [vmem:[#allocation4 + $0x1f8] sm:$0xff]
    %v1957 = vunpack.c.l.s8.bf16 %v1893
    %v1958 = vunpack.c.l.s8.bf16 %v1894
    %v1959 = vunpack.c.h.s8.bf16 %v1893
    %v1960 = vunpack.c.h.s8.bf16 %v1894
    %v1961 = vunpack.c.l.s8.bf16 %v1895
    %v1962 = vunpack.c.l.s8.bf16 %v1896
    %v1963 = vunpack.c.h.s8.bf16 %v1895
    %v1964 = vunpack.c.h.s8.bf16 %v1896
    %v1965 = vunpack.c.l.s8.bf16 %v1897
    %v1966 = vunpack.c.l.s8.bf16 %v1898
    %v1967 = vunpack.c.h.s8.bf16 %v1897
    %v1968 = vunpack.c.h.s8.bf16 %v1898
    %v1969 = vunpack.c.l.s8.bf16 %v1899
    %v1970 = vunpack.c.l.s8.bf16 %v1900
    %v1971 = vunpack.c.h.s8.bf16 %v1899
    %v1972 = vunpack.c.h.s8.bf16 %v1900
    %v1973 = vunpack.c.l.s8.bf16 %v1901
    %v1974 = vunpack.c.l.s8.bf16 %v1902
    %v1975 = vunpack.c.h.s8.bf16 %v1901
    %v1976 = vunpack.c.h.s8.bf16 %v1902
    %v1977 = vunpack.c.l.s8.bf16 %v1903
    %v1978 = vunpack.c.l.s8.bf16 %v1904
    %v1979 = vunpack.c.h.s8.bf16 %v1903
    %v1980 = vunpack.c.h.s8.bf16 %v1904
    %v1981 = vunpack.c.l.s8.bf16 %v1905
    %v1982 = vunpack.c.l.s8.bf16 %v1906
    %v1983 = vunpack.c.h.s8.bf16 %v1905
    %v1984 = vunpack.c.h.s8.bf16 %v1906
    %v1985 = vunpack.c.l.s8.bf16 %v1907
    %v1986 = vunpack.c.l.s8.bf16 %v1908
    %v1987 = vunpack.c.h.s8.bf16 %v1907
    %v1988 = vunpack.c.h.s8.bf16 %v1908
    %v1989 = vunpack.c.l.s8.bf16 %v1909
    %v1990 = vunpack.c.l.s8.bf16 %v1910
    %v1991 = vunpack.c.h.s8.bf16 %v1909
    %v1992 = vunpack.c.h.s8.bf16 %v1910
    %v1993 = vunpack.c.l.s8.bf16 %v1911
    %v1994 = vunpack.c.l.s8.bf16 %v1912
    %v1995 = vunpack.c.h.s8.bf16 %v1911
    %v1996 = vunpack.c.h.s8.bf16 %v1912
    %v1997 = vunpack.c.l.s8.bf16 %v1913
    %v1998 = vunpack.c.l.s8.bf16 %v1914
    %v1999 = vunpack.c.h.s8.bf16 %v1913
    %v2000 = vunpack.c.h.s8.bf16 %v1914
    %v2001 = vunpack.c.l.s8.bf16 %v1915
    %v2002 = vunpack.c.l.s8.bf16 %v1916
    %v2003 = vunpack.c.h.s8.bf16 %v1915
    %v2004 = vunpack.c.h.s8.bf16 %v1916
    %v2005 = vunpack.c.l.s8.bf16 %v1917
    %v2006 = vunpack.c.l.s8.bf16 %v1918
    %v2007 = vunpack.c.h.s8.bf16 %v1917
    %v2008 = vunpack.c.h.s8.bf16 %v1918
    %v2009 = vunpack.c.l.s8.bf16 %v1919
    %v2010 = vunpack.c.l.s8.bf16 %v1920
    %v2011 = vunpack.c.h.s8.bf16 %v1919
    %v2012 = vunpack.c.h.s8.bf16 %v1920
    %v2013 = vunpack.c.l.s8.bf16 %v1921
    %v2014 = vunpack.c.l.s8.bf16 %v1922
    %v2015 = vunpack.c.h.s8.bf16 %v1921
    %v2016 = vunpack.c.h.s8.bf16 %v1922
    %v2017 = vunpack.c.l.s8.bf16 %v1923
    %v2018 = vunpack.c.l.s8.bf16 %v1924
    %v2019 = vunpack.c.h.s8.bf16 %v1923
    %v2020 = vunpack.c.h.s8.bf16 %v1924
    %v2021 = vunpack.c.l.s8.bf16 %v1925
    %v2022 = vunpack.c.l.s8.bf16 %v1926
    %v2023 = vunpack.c.h.s8.bf16 %v1925
    %v2024 = vunpack.c.h.s8.bf16 %v1926
    %v2025 = vunpack.c.l.s8.bf16 %v1927
    %v2026 = vunpack.c.l.s8.bf16 %v1928
    %v2027 = vunpack.c.h.s8.bf16 %v1927
    %v2028 = vunpack.c.h.s8.bf16 %v1928
    %v2029 = vunpack.c.l.s8.bf16 %v1929
    %v2030 = vunpack.c.l.s8.bf16 %v1930
    %v2031 = vunpack.c.h.s8.bf16 %v1929
    %v2032 = vunpack.c.h.s8.bf16 %v1930
    %v2033 = vunpack.c.l.s8.bf16 %v1931
    %v2034 = vunpack.c.l.s8.bf16 %v1932
    %v2035 = vunpack.c.h.s8.bf16 %v1931
    %v2036 = vunpack.c.h.s8.bf16 %v1932
    %v2037 = vunpack.c.l.s8.bf16 %v1933
    %v2038 = vunpack.c.l.s8.bf16 %v1934
    %v2039 = vunpack.c.h.s8.bf16 %v1933
    %v2040 = vunpack.c.h.s8.bf16 %v1934
    %v2041 = vunpack.c.l.s8.bf16 %v1935
    %v2042 = vunpack.c.l.s8.bf16 %v1936
    %v2043 = vunpack.c.h.s8.bf16 %v1935
    %v2044 = vunpack.c.h.s8.bf16 %v1936
    %v2045 = vunpack.c.l.s8.bf16 %v1937
    %v2046 = vunpack.c.l.s8.bf16 %v1938
    %v2047 = vunpack.c.h.s8.bf16 %v1937
    %v2048 = vunpack.c.h.s8.bf16 %v1938
    %v2049 = vunpack.c.l.s8.bf16 %v1939
    %v2050 = vunpack.c.l.s8.bf16 %v1940
    %v2051 = vunpack.c.h.s8.bf16 %v1939
    %v2052 = vunpack.c.h.s8.bf16 %v1940
    %v2053 = vunpack.c.l.s8.bf16 %v1941
    %v2054 = vunpack.c.l.s8.bf16 %v1942
    %v2055 = vunpack.c.h.s8.bf16 %v1941
    %v2056 = vunpack.c.h.s8.bf16 %v1942
    %v2057 = vunpack.c.l.s8.bf16 %v1943
    %v2058 = vunpack.c.l.s8.bf16 %v1944
    %v2059 = vunpack.c.h.s8.bf16 %v1943
    %v2060 = vunpack.c.h.s8.bf16 %v1944
    %v2061 = vunpack.c.l.s8.bf16 %v1945
    %v2062 = vunpack.c.l.s8.bf16 %v1946
    %v2063 = vunpack.c.h.s8.bf16 %v1945
    %v2064 = vunpack.c.h.s8.bf16 %v1946
    %v2065 = vunpack.c.l.s8.bf16 %v1947
    %v2066 = vunpack.c.l.s8.bf16 %v1948
    %v2067 = vunpack.c.h.s8.bf16 %v1947
    %v2068 = vunpack.c.h.s8.bf16 %v1948
    %v2069 = vunpack.c.l.s8.bf16 %v1949
    %v2070 = vunpack.c.l.s8.bf16 %v1950
    %v2071 = vunpack.c.h.s8.bf16 %v1949
    %v2072 = vunpack.c.h.s8.bf16 %v1950
    %v2073 = vunpack.c.l.s8.bf16 %v1951
    %v2074 = vunpack.c.l.s8.bf16 %v1952
    %v2075 = vunpack.c.h.s8.bf16 %v1951
    %v2076 = vunpack.c.h.s8.bf16 %v1952
    %v2077 = vunpack.c.l.s8.bf16 %v1953
    %v2078 = vunpack.c.l.s8.bf16 %v1954
    %v2079 = vunpack.c.h.s8.bf16 %v1953
    %v2080 = vunpack.c.h.s8.bf16 %v1954
    %v2081 = vunpack.c.l.s8.bf16 %v1955
    %v2082 = vunpack.c.l.s8.bf16 %v1956
    %v2083 = vunpack.c.h.s8.bf16 %v1955
    %v2084 = vunpack.c.h.s8.bf16 %v1956
    %2085 = vmatprep.subr.bf16.mxu0 %v1972
    %2086 = vmatpush1.bf16.msra.mxu0 %v1971
    %2087 = vmatprep.subr.bf16.mxu0 %v1970
    %2088 = vmatpush1.bf16.msra.mxu0 %v1969
    %2089 = vmatprep.subr.bf16.mxu0 %v1968
    %2090 = vmatpush1.bf16.msra.mxu0 %v1967
    %2091 = vmatprep.subr.bf16.mxu0 %v1966
    %2092 = vmatpush1.bf16.msra.mxu0 %v1965
    %2093 = vmatprep.subr.bf16.mxu0 %v1964
    %2094 = vmatpush1.bf16.msra.mxu0 %v1963
    %2095 = vmatprep.subr.bf16.mxu0 %v1962
    %2096 = vmatpush1.bf16.msra.mxu0 %v1961
    %2097 = vmatprep.subr.bf16.mxu0 %v1960
    %2098 = vmatpush1.bf16.msra.mxu0 %v1959
    %2099 = vmatprep.subr.bf16.mxu0 %v1958
    %2100 = vmatpush1.bf16.msra.mxu0 %v1957
    %2101 = vmatprep.subr.bf16.mxu0 %v1988
    %2102 = vmatpush2.bf16.msra.mxu0 %v1987
    %2103 = vmatprep.subr.bf16.mxu0 %v1986
    %2104 = vmatpush2.bf16.msra.mxu0 %v1985
    %2105 = vmatprep.subr.bf16.mxu0 %v1984
    %2106 = vmatpush2.bf16.msra.mxu0 %v1983
    %2107 = vmatprep.subr.bf16.mxu0 %v1982
    %2108 = vmatpush2.bf16.msra.mxu0 %v1981
    %2109 = vmatprep.subr.bf16.mxu0 %v1980
    %2110 = vmatpush2.bf16.msra.mxu0 %v1979
    %2111 = vmatprep.subr.bf16.mxu0 %v1978
    %2112 = vmatpush2.bf16.msra.mxu0 %v1977
    %2113 = vmatprep.subr.bf16.mxu0 %v1976
    %2114 = vmatpush2.bf16.msra.mxu0 %v1975
    %2115 = vmatprep.subr.bf16.mxu0 %v1974
    %2116 = vmatpush2.bf16.msra.mxu0 %v1973
    %2117 = vmatprep.mubr.bf16.mxu0 %v1886
    %2118 = vmatmul.mubr.bf16.gmra.mxu0 %v1885
    %v2119 = vpop.f32.mrf.mxu0
    %v2120 = vadd.f32 0.0, %v2119
    %v2121 = vpop.f32.mrf.mxu0
    %v2122 = vadd.f32 0.0, %v2121
    %v2123 = vpop.f32.mrf.mxu0
    %v2124 = vpop.f32.mrf.mxu0
    %2125 = vdwg.mxu0
    %2126 = vmatprep.subr.bf16.mxu0 %v2004
    %2127 = vmatpush1.bf16.msra.mxu0 %v2003
    %2128 = vmatprep.subr.bf16.mxu0 %v2002
    %2129 = vmatpush1.bf16.msra.mxu0 %v2001
    %2130 = vmatprep.subr.bf16.mxu0 %v2000
    %2131 = vmatpush1.bf16.msra.mxu0 %v1999
    %2132 = vmatprep.subr.bf16.mxu0 %v1998
    %2133 = vmatpush1.bf16.msra.mxu0 %v1997
    %2134 = vmatprep.subr.bf16.mxu0 %v1996
    %2135 = vmatpush1.bf16.msra.mxu0 %v1995
    %2136 = vmatprep.subr.bf16.mxu0 %v1994
    %2137 = vmatpush1.bf16.msra.mxu0 %v1993
    %2138 = vmatprep.subr.bf16.mxu0 %v1992
    %2139 = vmatpush1.bf16.msra.mxu0 %v1991
    %2140 = vmatprep.subr.bf16.mxu0 %v1990
    %2141 = vmatpush1.bf16.msra.mxu0 %v1989
    %2142 = vmatprep.subr.bf16.mxu0 %v2020
    %2143 = vmatpush2.bf16.msra.mxu0 %v2019
    %2144 = vmatprep.subr.bf16.mxu0 %v2018
    %2145 = vmatpush2.bf16.msra.mxu0 %v2017
    %2146 = vmatprep.subr.bf16.mxu0 %v2016
    %2147 = vmatpush2.bf16.msra.mxu0 %v2015
    %2148 = vmatprep.subr.bf16.mxu0 %v2014
    %2149 = vmatpush2.bf16.msra.mxu0 %v2013
    %2150 = vmatprep.subr.bf16.mxu0 %v2012
    %2151 = vmatpush2.bf16.msra.mxu0 %v2011
    %2152 = vmatprep.subr.bf16.mxu0 %v2010
    %2153 = vmatpush2.bf16.msra.mxu0 %v2009
    %2154 = vmatprep.subr.bf16.mxu0 %v2008
    %2155 = vmatpush2.bf16.msra.mxu0 %v2007
    %2156 = vmatprep.subr.bf16.mxu0 %v2006
    %2157 = vmatpush2.bf16.msra.mxu0 %v2005
    %2158 = vmatprep.mubr.bf16.mxu0 %v1888
    %2159 = vmatmul.mubr.bf16.gmra.mxu0 %v1887
    %v2160 = vpop.f32.mrf.mxu0
    %v2161 = vadd.f32 %v2120, %v2160
    %v2162 = vpop.f32.mrf.mxu0
    %v2163 = vadd.f32 %v2122, %v2162
    %v2164 = vpop.f32.mrf.mxu0
    %v2165 = vpop.f32.mrf.mxu0
    %2166 = vdwg.mxu0
    %2167 = vmatprep.subr.bf16.mxu0 %v2036
    %2168 = vmatpush1.bf16.msra.mxu0 %v2035
    %2169 = vmatprep.subr.bf16.mxu0 %v2034
    %2170 = vmatpush1.bf16.msra.mxu0 %v2033
    %2171 = vmatprep.subr.bf16.mxu0 %v2032
    %2172 = vmatpush1.bf16.msra.mxu0 %v2031
    %2173 = vmatprep.subr.bf16.mxu0 %v2030
    %2174 = vmatpush1.bf16.msra.mxu0 %v2029
    %2175 = vmatprep.subr.bf16.mxu0 %v2028
    %2176 = vmatpush1.bf16.msra.mxu0 %v2027
    %2177 = vmatprep.subr.bf16.mxu0 %v2026
    %2178 = vmatpush1.bf16.msra.mxu0 %v2025
    %2179 = vmatprep.subr.bf16.mxu0 %v2024
    %2180 = vmatpush1.bf16.msra.mxu0 %v2023
    %2181 = vmatprep.subr.bf16.mxu0 %v2022
    %2182 = vmatpush1.bf16.msra.mxu0 %v2021
    %2183 = vmatprep.subr.bf16.mxu0 %v2052
    %2184 = vmatpush2.bf16.msra.mxu0 %v2051
    %2185 = vmatprep.subr.bf16.mxu0 %v2050
    %2186 = vmatpush2.bf16.msra.mxu0 %v2049
    %2187 = vmatprep.subr.bf16.mxu0 %v2048
    %2188 = vmatpush2.bf16.msra.mxu0 %v2047
    %2189 = vmatprep.subr.bf16.mxu0 %v2046
    %2190 = vmatpush2.bf16.msra.mxu0 %v2045
    %2191 = vmatprep.subr.bf16.mxu0 %v2044
    %2192 = vmatpush2.bf16.msra.mxu0 %v2043
    %2193 = vmatprep.subr.bf16.mxu0 %v2042
    %2194 = vmatpush2.bf16.msra.mxu0 %v2041
    %2195 = vmatprep.subr.bf16.mxu0 %v2040
    %2196 = vmatpush2.bf16.msra.mxu0 %v2039
    %2197 = vmatprep.subr.bf16.mxu0 %v2038
    %2198 = vmatpush2.bf16.msra.mxu0 %v2037
    %2199 = vmatprep.mubr.bf16.mxu0 %v1890
    %2200 = vmatmul.mubr.bf16.gmra.mxu0 %v1889
    %v2201 = vpop.f32.mrf.mxu0
    %v2202 = vadd.f32 %v2161, %v2201
    %v2203 = vpop.f32.mrf.mxu0
    %v2204 = vadd.f32 %v2163, %v2203
    %v2205 = vpop.f32.mrf.mxu0
    %v2206 = vpop.f32.mrf.mxu0
    %2207 = vdwg.mxu0
    %2208 = vmatprep.subr.bf16.mxu0 %v2068
    %2209 = vmatpush1.bf16.msra.mxu0 %v2067
    %2210 = vmatprep.subr.bf16.mxu0 %v2066
    %2211 = vmatpush1.bf16.msra.mxu0 %v2065
    %2212 = vmatprep.subr.bf16.mxu0 %v2064
    %2213 = vmatpush1.bf16.msra.mxu0 %v2063
    %2214 = vmatprep.subr.bf16.mxu0 %v2062
    %2215 = vmatpush1.bf16.msra.mxu0 %v2061
    %2216 = vmatprep.subr.bf16.mxu0 %v2060
    %2217 = vmatpush1.bf16.msra.mxu0 %v2059
    %2218 = vmatprep.subr.bf16.mxu0 %v2058
    %2219 = vmatpush1.bf16.msra.mxu0 %v2057
    %2220 = vmatprep.subr.bf16.mxu0 %v2056
    %2221 = vmatpush1.bf16.msra.mxu0 %v2055
    %2222 = vmatprep.subr.bf16.mxu0 %v2054
    %2223 = vmatpush1.bf16.msra.mxu0 %v2053
    %2224 = vmatprep.subr.bf16.mxu0 %v2084
    %2225 = vmatpush2.bf16.msra.mxu0 %v2083
    %2226 = vmatprep.subr.bf16.mxu0 %v2082
    %2227 = vmatpush2.bf16.msra.mxu0 %v2081
    %2228 = vmatprep.subr.bf16.mxu0 %v2080
    %2229 = vmatpush2.bf16.msra.mxu0 %v2079
    %2230 = vmatprep.subr.bf16.mxu0 %v2078
    %2231 = vmatpush2.bf16.msra.mxu0 %v2077
    %2232 = vmatprep.subr.bf16.mxu0 %v2076
    %2233 = vmatpush2.bf16.msra.mxu0 %v2075
    %2234 = vmatprep.subr.bf16.mxu0 %v2074
    %2235 = vmatpush2.bf16.msra.mxu0 %v2073
    %2236 = vmatprep.subr.bf16.mxu0 %v2072
    %2237 = vmatpush2.bf16.msra.mxu0 %v2071
    %2238 = vmatprep.subr.bf16.mxu0 %v2070
    %2239 = vmatpush2.bf16.msra.mxu0 %v2069
    %2240 = vmatprep.mubr.bf16.mxu0 %v1892
    %2241 = vmatmul.mubr.bf16.gmra.mxu0 %v1891
    %v2242 = vpop.f32.mrf.mxu0
    %v2243 = vadd.f32 %v2202, %v2242
    %v2244 = vpop.f32.mrf.mxu0
    %v2245 = vadd.f32 %v2204, %v2244
    %v2246 = vpop.f32.mrf.mxu0
    %v2247 = vpop.f32.mrf.mxu0
    %2248 = vdwg.mxu0
    %v2249 = vld [vmem:[#allocation12 + $0x2b] sm:$0x3]
    %v2251 = vlaneseq
    %v2252 = vshrl.u32 %v2251, 7
    %v2253 = vsub.s32 0, %v2252
    %v2254 = vrot.slane %v2249, %v2253
    %v2255 = vlaneseq
    %v2256 = vshrl.u32 %v2255, 7
    %v2257 = vsub.s32 1, %v2256
    %v2258 = vrot.slane %v2249, %v2257
    %v2261 = vmul.f32 %v2243, %v2254
    %v2262 = vmul.f32 %v2245, %v2258
    %v2263 = vld [vmem:[#allocation12 + $0x1d] sm:$0x3]
    %v2265 = vlaneseq
    %v2266 = vshrl.u32 %v2265, 7
    %v2267 = vsub.s32 0, %v2266
    %v2268 = vrot.slane %v2263, %v2267
    %v2269 = vlaneseq
    %v2270 = vshrl.u32 %v2269, 7
    %v2271 = vsub.s32 1, %v2270
    %v2272 = vrot.slane %v2263, %v2271
    %v2275 = vadd.f32 %v2261, %v2268
    %v2276 = vadd.f32 %v2262, %v2272
    %v2277 = vtanh.pop %v2275
    %v2278 = vtanh.pop %v2276
    %2279 = vst [vmem:[#allocation14] sm:$0xff] %v2277
    %2280 = vst [vmem:[#allocation14 + $0x8] sm:$0xff] %v2278
    // Predicated region
    $region46: #{tpu_custom_call.1} parent=1 // pred_check
      _
    $region47: #{tpu_custom_call.1} parent=1 // pred_check_branch
      %2282 = sbr.rel (0) target = $region49
    $region48: #{tpu_custom_call.1} parent=1 // pred_region
      %s2284 = ssub.s32 256, 256
      %2285 = vsyncadd [#allocation8], %s2284
      %s2287 = sshll.u32 [#allocation14], 4
      %s2288 = int_to_ptr.vmem [resolvable:$true] %s2287
      %2290 = dma.vmem_to_hbm [thread:$0]  %s2288, 256, %s7, [#allocation8]
    $region49: #{tpu_custom_call.1} parent=1 // pred_fallthru
      _
    // Predicated region
    $region50: #{tpu_custom_call.1} parent=1 // pred_check
      _
    $region51: #{tpu_custom_call.1} parent=1 // pred_check_branch
      %2292 = sbr.rel (0) target = $region53
    $region52: #{tpu_custom_call.1} parent=1 // pred_region
      %2293 = dma.done [#allocation8], 256
    $region53: #{tpu_custom_call.1} parent=1 // pred_fallthru
      _
    %2294 = vsyncpa [#allocation7], 1
    %2295 = vsyncpa [#allocation10], 1
    %2296 = vsyncpa [#allocation13], 1
    %2297 = vsyncpa [#allocation8], 1
  %2298 = vsyncmov [#allocation5]
  %s2299 = vpop.sfrf %2298
  %p2300 = scmp.eq.s32.totalorder %s2299, 0
  %p2301 = pneg %p2300
  %2303 = shalt.err (%p2301)
  %s2304 = scalar_lea.sflag [#allocation5], 1
  %2305 = vsyncmov %s2304
  %s2306 = vpop.sfrf %2305
  %p2307 = scmp.eq.s32.totalorder %s2306, 0
  %p2308 = pneg %p2307
  %2310 = shalt.err (%p2308)
  %s2311 = scalar_lea.sflag [#allocation5], 2
  %2312 = vsyncmov %s2311
  %s2313 = vpop.sfrf %2312
  %p2314 = scmp.eq.s32.totalorder %s2313, 0
  %p2315 = pneg %p2314
  %2317 = shalt.err (%p2315)

</llo_original>
